<compile_context>
chip_gen: v5e
topology: v5e:2x2
jax: 0.10.0
libtpu: 0.0.40
codegen_flags: <defaults>
</compile_context>

<pallas_src>
import jax
import jax.numpy as jnp
from jax.experimental import pallas as pl
from jax.experimental.pallas import tpu as pltpu

BN_EPS = 1e-5
NEG_SLOPE = 0.2
SLICE_FACTOR = 16


def _round_up(x, m):
    return (x + m - 1) // m * m


def _vmem_physical_bytes():
    try:
        return int(pltpu.get_tpu_info().vmem_capacity_bytes)
    except Exception:
        return 64 << 20   # conservative default (v7x per-core VMEM)


# ----------------------------- Pallas kernels ---------------------------------
def _bn_lrelu_epilogue(y, g, b):
    """y: (M, tn) f32 conv output; g/b: (1, tn) f32. BN batch stats folded to scale/shift."""
    mean = jnp.mean(y, axis=0, keepdims=True)                  # per-channel mean over M rows
    d = y - mean
    var = jnp.mean(d * d, axis=0, keepdims=True)               # biased, two-pass (no cancellation)
    scale = g * jax.lax.rsqrt(var + BN_EPS)
    shift = b - mean * scale
    z = y * scale + shift
    return jnp.where(z >= 0, z, NEG_SLOPE * z)


def conv_bn_lrelu_kernel(p_ref, w_ref, g_ref, b_ref, o_ref):
    """K untiled: grid = (Cout tiles ["parallel"],). No scratch, single fused pass.

    p_ref: (M, K) bf16 patches, w_ref: (K, tn) bf16 weights,
    g_ref/b_ref: (1, tn) f32 BN affine, o_ref: (M, tn) bf16 output.
    BN stats are exact under Cout tiling because each tile sees all M rows.
    """
    y = jnp.dot(p_ref[...], w_ref[...], preferred_element_type=jnp.float32)
    o_ref[...] = _bn_lrelu_epilogue(y, g_ref[...], b_ref[...]).astype(o_ref.dtype)


def conv_bn_lrelu_kernel_ktiled(p_ref, w_ref, g_ref, b_ref, o_ref, acc_ref):
    """Fallback when the full-K block does not fit VMEM.

    grid = (Cout tiles ["parallel"], K tiles ["arbitrary", reduction, innermost]).
    acc_ref: (M, tn) f32 accumulator scratch, resident across the K axis.
    """
    k = pl.program_id(1)

    @pl.when(k == 0)
    def _():
        acc_ref[...] = jnp.zeros_like(acc_ref)

    acc_ref[...] += jnp.dot(p_ref[...], w_ref[...], preferred_element_type=jnp.float32)

    @pl.when(k == pl.num_programs(1) - 1)
    def _():
        o_ref[...] = _bn_lrelu_epilogue(acc_ref[...], g_ref[...], b_ref[...]).astype(o_ref.dtype)


def _plan_tiles(M, K, Cp, budget):
    """Pick (tn, tk): lane-dense Cout tile; K untiled whenever the full-K block fits VMEM."""
    if Cp >= 512:
        tn = 256          # >=2 parallel Cout tiles -> both v7x cores, weight DMA overlap
    elif Cp >= 256:
        tn = 128
    else:
        tn = Cp           # 128-wide layers -> grid = (1,)

    def est(tk, acc):
        return (2 * M * tk * 2          # double-buffered bf16 patch tiles
                + 2 * tk * tn * 2       # double-buffered bf16 weight tiles
                + 2 * M * tn * 2        # double-buffered bf16 output tiles
                + 4 * tn * 4            # gamma / beta
                + (M * tn * 4 if acc else 0))   # f32 accumulator (k-tiled path only)

    if est(K, False) <= budget:
        return tn, K, est(K, False)
    for tk in (8192, 4096, 2048, 1024, 512, 256, 128):
        if tk < K and K % tk == 0 and est(tk, True) <= budget:
            return tn, tk, est(tk, True)
    return tn, 128, est(128, True)


def conv_bn_lrelu(patches, w_mat, gamma, beta):
    """patches: (M, K) bf16 (K order = kh,kw,cin_padded), w_mat: (K, Cp) bf16,
    gamma/beta: (1, Cp) f32. Returns (M, Cp) bf16 post-BN/LeakyReLU activations."""
    M, K = patches.shape
    Cp = w_mat.shape[1]
    assert w_mat.shape[0] == K and K % 128 == 0 and Cp % 128 == 0

    phys = _vmem_physical_bytes()
    cap = phys // 2                                   # <=32 MiB on v7x, <=64 MiB on v5e/v6e
    budget = max(cap - (8 << 20), 8 << 20)
    tn, tk, vmem_est = _plan_tiles(M, K, Cp, budget)
    k_tiles = K // tk
    vmem_limit = int(min(max(vmem_est + (8 << 20), 16 << 20), cap))

    if k_tiles == 1:
        kernel = conv_bn_lrelu_kernel
        dim_sem = ("parallel",)
        grid_spec = pltpu.PrefetchScalarGridSpec(
            num_scalar_prefetch=0,
            grid=(Cp // tn,),
            in_specs=[
                pl.BlockSpec((M, K), lambda j: (0, 0)),
                pl.BlockSpec((K, tn), lambda j: (0, j)),
                pl.BlockSpec((1, tn), lambda j: (0, j)),
                pl.BlockSpec((1, tn), lambda j: (0, j)),
            ],
            out_specs=pl.BlockSpec((M, tn), lambda j: (0, j)),
        )
    else:
        kernel = conv_bn_lrelu_kernel_ktiled
        dim_sem = ("parallel", "arbitrary")
        grid_spec = pltpu.PrefetchScalarGridSpec(
            num_scalar_prefetch=0,
            grid=(Cp // tn, k_tiles),
            in_specs=[
                pl.BlockSpec((M, tk), lambda j, k: (0, k)),
                pl.BlockSpec((tk, tn), lambda j, k: (k, j)),
                pl.BlockSpec((1, tn), lambda j, k: (0, j)),
                pl.BlockSpec((1, tn), lambda j, k: (0, j)),
            ],
            out_specs=pl.BlockSpec((M, tn), lambda j, k: (0, j)),
            scratch_shapes=[pltpu.VMEM((M, tn), jnp.float32)],
        )

    return pl.pallas_call(
        kernel,
        out_shape=jax.ShapeDtypeStruct((M, Cp), jnp.bfloat16),
        grid_spec=grid_spec,
        compiler_params=pltpu.CompilerParams(
            dimension_semantics=dim_sem,
            vmem_limit_bytes=vmem_limit,
        ),
    )(patches, w_mat, gamma, beta)


# ------------------------------ JAX glue --------------------------------------
def im2col_nhwc(x, kh=4, kw=4, stride=2, pad=1):
    """x: (B, H, W, C) NHWC -> patches (B*Ho*Wo, kh*kw*C) with K order (kh, kw, c)."""
    B, H, W, C = x.shape
    xp = jnp.pad(x, ((0, 0), (pad, pad), (pad, pad), (0, 0)))
    Ho = (H + 2 * pad - kh) // stride + 1
    Wo = (W + 2 * pad - kw) // stride + 1
    cols = []
    for i in range(kh):
        for j in range(kw):
            cols.append(xp[:, i:i + stride * Ho:stride, j:j + stride * Wo:stride, :])
    patches = jnp.stack(cols, axis=3)                     # (B, Ho, Wo, kh*kw, C)
    patches = patches.reshape(B * Ho * Wo, kh * kw * C)   # K order = (kh, kw, c)
    return patches, Ho, Wo


def init_params(key):
    """Deterministic kaiming_normal_ (leaky_relu gain, fan_in) conv weights + BN affine,
    pre-packed ONCE for the kernel: (K, Cout) layout, Cin/Cout zero-padded to lane-dense
    multiples, bf16 weights, f32 (1, Cp) gamma/beta."""
    gain = (2.0 / (1.0 + NEG_SLOPE ** 2)) ** 0.5
    chans = [(2 * SLICE_FACTOR + 1, 64), (64, 128), (128, 256), (256, 512), (512, 512)]
    params = []
    # input channels padded 33 -> 40 so K = 16*40 = 640 is a multiple of 128
    prev_cout_pad = _round_up(chans[0][0] * 16, 128) // 16
    for cin, cout in chans:
        key, sub = jax.random.split(key)
        fan_in = cin * 16
        std = gain / (fan_in ** 0.5)
        w = jax.random.normal(sub, (cout, cin, 4, 4), jnp.float32) * std
        cin_pad = prev_cout_pad
        cout_pad = _round_up(cout, 128)
        # pack: (cout, cin, kh, kw) -> (kh, kw, cin_pad, cout_pad) -> (K, Cp) bf16
        w_p = jnp.transpose(w, (2, 3, 1, 0))
        w_p = jnp.pad(w_p, ((0, 0), (0, 0), (0, cin_pad - cin), (0, cout_pad - cout)))
        w_p = w_p.reshape(16 * cin_pad, cout_pad).astype(jnp.bfloat16)
        gamma = jnp.concatenate([jnp.ones((cout,), jnp.float32),
                                 jnp.zeros((cout_pad - cout,), jnp.float32)]).reshape(1, cout_pad)
        beta = jnp.zeros((1, cout_pad), jnp.float32)
        params.append({"w": w_p, "gamma": gamma, "beta": beta,
                       "cout": cout, "cin_pad": cin_pad})
        prev_cout_pad = cout_pad
    return params


def passive_sep_enc_cnn_forward(observations, params):
    x = observations["mixed_bin_audio_mag"]                    # (B, H, W, 2) f32
    B, H, W, C = x.shape
    sf = SLICE_FACTOR
    # NHWC equivalent of the PyTorch permute/view/reshape slicing:
    # sliced channel index (c*sf + s) at (b, h', w) == x[b, s*(H//sf) + h', w, c].
    xs = x.reshape(B, sf, H // sf, W, C)                       # (B, s, h', W, c)
    xs = jnp.transpose(xs, (0, 2, 3, 4, 1))                    # (B, h', W, c, s)
    xs = xs.reshape(B, H // sf, W, C * sf)                     # (B, h', W, 2*sf)

    tc = observations["target_class"].astype(jnp.float32)      # (B, 1)
    tc = jnp.broadcast_to(tc[:, None, None, :], (B, H // sf, W, 1)) + 1.0

    # Concatenate audio slices + target-class plane + zero padding to the padded
    # layer-1 Cin (33 -> 40) in one shot, already in bf16 (no later pad/cast copies).
    cin_pad0 = params[0]["cin_pad"]
    pieces = [xs.astype(jnp.bfloat16), tc.astype(jnp.bfloat16)]
    pad_ch = cin_pad0 - (C * sf + 1)
    if pad_ch > 0:
        pieces.append(jnp.zeros((B, H // sf, W, pad_ch), jnp.bfloat16))
    out_nhwc = jnp.concatenate(pieces, axis=-1)                # (B, h', W, 40) bf16

    skip_feats = []
    for lp in params:
        patches, Ho, Wo = im2col_nhwc(out_nhwc)                # (M, 16*cin_pad) bf16
        y = conv_bn_lrelu(patches, lp["w"], lp["gamma"], lp["beta"])   # (M, cout_pad) bf16
        out_nhwc = y.reshape(B, Ho, Wo, -1)                    # padded bf16 NHWC -> next layer
        # Only the API-facing skip feature is sliced/cast (NCHW f32 for parity).
        skip = jnp.transpose(out_nhwc[..., :lp["cout"]], (0, 3, 1, 2)).astype(jnp.float32)
        skip_feats.append(skip)

    flat = skip_feats[-1].reshape(B, -1)                       # NCHW flatten order
    return flat, skip_feats[:-1][::-1]


# ------------------------------- main -----------------------------------------
if __name__ == "__main__":
    key = jax.random.PRNGKey(0)
    k_params, k_audio, k_cls = jax.random.split(key, 3)

    params = init_params(k_params)

    # Small but consistent shapes: H must be a multiple of 16 and survive 5 stride-2
    # convs; H = 16*32 -> internal (B, 32, 32, 40) NHWC -> final (B, 512, 1, 1).
    B, H, W = 2, 16 * 32, 32
    mixed_bin_audio_mag = jax.random.uniform(k_audio, (B, H, W, 2), jnp.float32)
    target_class = jax.random.randint(k_cls, (B, 1), 0, 10).astype(jnp.float32)

    observations = {
        "mixed_bin_audio_mag": mixed_bin_audio_mag,
        "target_class": target_class,
    }

    flat, skips = passive_sep_enc_cnn_forward(observations, params)
    flat = jax.block_until_ready(flat)
    skips = jax.block_until_ready(skips)

    assert flat.shape == (B, 512), flat.shape
    assert flat.dtype == jnp.float32
    assert len(skips) == 4
    assert skips[0].shape == (B, 512, 2, 2)     # deepest skip first (reversed)
    assert skips[-1].shape == (B, 64, 16, 16)
    assert bool(jnp.isfinite(flat).all())

    print("KERNEL_OK")
</pallas_src>

<mosaic_0001>
module attributes {stable_mosaic.version = 11 : i64} {
  func.func @conv_bn_lrelu_kernel(%arg0: i32, %arg1: memref<512x640xbf16, #tpu.memory_space<vmem>>, %arg2: memref<640x128xbf16, #tpu.memory_space<vmem>>, %arg3: memref<1x128xf32, #tpu.memory_space<vmem>>, %arg4: memref<1x128xf32, #tpu.memory_space<vmem>>, %arg5: memref<512x128xbf16, #tpu.memory_space<vmem>>) attributes {dimension_semantics = [#tpu.dimension_semantics<parallel>], iteration_bounds = array<i64: 1>, scalar_prefetch = 0 : i64, scratch_operands = 0 : i64, tpu.core_type = #tpu.core_type<tc>, window_params = [{pipeline_mode = #tpu.pipeline_mode<synchronous>, transform_indices = @transform_0, window_bounds = array<i64: 512, 640>}, {transform_indices = @transform_1, window_bounds = array<i64: 640, 128>}, {transform_indices = @transform_2, window_bounds = array<i64: 1, 128>}, {transform_indices = @transform_3, window_bounds = array<i64: 1, 128>}, {transform_indices = @transform_4, window_bounds = array<i64: 512, 128>}]} {
    %c0 = arith.constant 0 : index
    %c0_0 = arith.constant 0 : index
    %0 = vector.load %arg1[%c0, %c0_0] : memref<512x640xbf16, #tpu.memory_space<vmem>>, vector<512x640xbf16>
    %c0_1 = arith.constant 0 : index
    %c0_2 = arith.constant 0 : index
    %1 = vector.load %arg2[%c0_1, %c0_2] : memref<640x128xbf16, #tpu.memory_space<vmem>>, vector<640x128xbf16>
    %cst = arith.constant dense<0.000000e+00> : vector<512x128xf32>
    %2 = tpu.matmul %0, %1, %cst {dimension_numbers = #tpu.dot_dimension_numbers<[1], [0], [0], [1], [0, 0, 1, 1], [], []>} : vector<512x640xbf16>, vector<640x128xbf16>, vector<512x128xf32> -> vector<512x128xf32>
    %c0_3 = arith.constant 0 : index
    %c0_4 = arith.constant 0 : index
    %3 = vector.load %arg3[%c0_3, %c0_4] : memref<1x128xf32, #tpu.memory_space<vmem>>, vector<1x128xf32>
    %c0_5 = arith.constant 0 : index
    %c0_6 = arith.constant 0 : index
    %4 = vector.load %arg4[%c0_5, %c0_6] : memref<1x128xf32, #tpu.memory_space<vmem>>, vector<1x128xf32>
    %cst_7 = arith.constant dense<0.000000e+00> : vector<128xf32>
    %5 = vector.multi_reduction <add>, %2, %cst_7 [0] : vector<512x128xf32> to vector<128xf32>
    %6 = vector.shape_cast %5 : vector<128xf32> to vector<1x128xf32>
    %cst_8 = arith.constant 5.120000e+02 : f32
    %7 = vector.broadcast %cst_8 : f32 to vector<1x128xf32>
    %8 = arith.divf %6, %7 : vector<1x128xf32>
    %9 = vector.broadcast %8 : vector<1x128xf32> to vector<512x128xf32>
    %10 = arith.subf %2, %9 : vector<512x128xf32>
    %11 = arith.mulf %10, %10 : vector<512x128xf32>
    %cst_9 = arith.constant dense<0.000000e+00> : vector<128xf32>
    %12 = vector.multi_reduction <add>, %11, %cst_9 [0] : vector<512x128xf32> to vector<128xf32>
    %13 = vector.shape_cast %12 : vector<128xf32> to vector<1x128xf32>
    %cst_10 = arith.constant 5.120000e+02 : f32
    %14 = vector.broadcast %cst_10 : f32 to vector<1x128xf32>
    %15 = arith.divf %13, %14 : vector<1x128xf32>
    %cst_11 = arith.constant 9.99999974E-6 : f32
    %16 = vector.broadcast %cst_11 : f32 to vector<1x128xf32>
    %17 = arith.addf %15, %16 : vector<1x128xf32>
    %18 = math.rsqrt %17 : vector<1x128xf32>
    %19 = arith.mulf %3, %18 : vector<1x128xf32>
    %20 = arith.mulf %8, %19 : vector<1x128xf32>
    %21 = arith.subf %4, %20 : vector<1x128xf32>
    %22 = vector.broadcast %19 : vector<1x128xf32> to vector<512x128xf32>
    %23 = arith.mulf %2, %22 : vector<512x128xf32>
    %24 = vector.broadcast %21 : vector<1x128xf32> to vector<512x128xf32>
    %25 = arith.addf %23, %24 : vector<512x128xf32>
    %cst_12 = arith.constant 0.000000e+00 : f32
    %26 = vector.broadcast %cst_12 : f32 to vector<512x128xf32>
    %27 = arith.cmpf oge, %25, %26 : vector<512x128xf32>
    %cst_13 = arith.constant 2.000000e-01 : f32
    %28 = vector.broadcast %cst_13 : f32 to vector<512x128xf32>
    %29 = arith.mulf %28, %25 : vector<512x128xf32>
    %30 = arith.select %27, %25, %29 : vector<512x128xi1>, vector<512x128xf32>
    %31 = arith.truncf %30 : vector<512x128xf32> to vector<512x128xbf16>
    %c0_14 = arith.constant 0 : index
    %c0_15 = arith.constant 0 : index
    %32 = vector.load %arg5[%c0_14, %c0_15] : memref<512x128xbf16, #tpu.memory_space<vmem>>, vector<512x128xbf16>
    tpu.vector_store %arg5[%c0_14, %c0_15], %31 {strides = array<i32>} : memref<512x128xbf16, #tpu.memory_space<vmem>>, vector<512x128xbf16>,
    return
  }
  func.func @transform_0(%arg0: i32) -> (i32, i32) {
    %c0_i32 = arith.constant 0 : i32
    %c0_i32_0 = arith.constant 0 : i32
    %c0_i32_1 = arith.constant 0 : i32
    return %c0_i32, %c0_i32_0 : i32, i32
  }
  func.func @transform_1(%arg0: i32) -> (i32, i32) {
    %c0_i32 = arith.constant 0 : i32
    %c0_i32_0 = arith.constant 0 : i32
    return %c0_i32, %arg0 : i32, i32
  }
  func.func @transform_2(%arg0: i32) -> (i32, i32) {
    %c0_i32 = arith.constant 0 : i32
    %c0_i32_0 = arith.constant 0 : i32
    return %c0_i32, %arg0 : i32, i32
  }
  func.func @transform_3(%arg0: i32) -> (i32, i32) {
    %c0_i32 = arith.constant 0 : i32
    %c0_i32_0 = arith.constant 0 : i32
    return %c0_i32, %arg0 : i32, i32
  }
  func.func @transform_4(%arg0: i32) -> (i32, i32) {
    %c0_i32 = arith.constant 0 : i32
    %c0_i32_0 = arith.constant 0 : i32
    return %c0_i32, %arg0 : i32, i32
  }
}

</mosaic_0001>

<llo_original>
// kernel: tpu_custom_call.1
$region0: #{tpu_custom_call.1}
  #allocation0 [shape = 'u32[]', space=smem, size = 0x4, offset = 0x4, fixed_abs, tag = 'smem constant byte address 0x4 - core index']
  #allocation1 [shape = 'u32[72,128]{1,0:T(1,128)}', space=vmem, size = 0x9000, scoped, tag = 'internal scratch']
  %s0 = inlined_call_operand.hbm [shape: bf16[512,640], index: 0, kind: input, shape index: {}]
  %s1 = inlined_call_operand.hbm [shape: bf16[640,128], index: 1, kind: input, shape index: {}]
  %s2 = inlined_call_operand.vmem [shape: f32[1,128], index: 2, kind: input, shape index: {}]
  %s3 = inlined_call_operand.vmem [shape: f32[1,128], index: 3, kind: input, shape index: {}]
  %s4 = inlined_call_operand.hbm [shape: bf16[512,128], index: 4, kind: output, shape index: {}]
  %s5 = sld [smem:[#allocation0]]
  $region34: #{tpu_custom_call.1} parent=0
    _
  %s7 = ssub.s32 1, %s5
  %s8 = scalar_select 0, %s7, %s5
  $region1: #{tpu_custom_call.1} parent=0
    #allocation2 [shape = 'u8[655360]{0}', space=vmem, size = 0xa0000, scoped, tag = 'input window, operand 0, single buffered']
    #allocation3 [shape = 's32[1]{0}', space=sflag, size = 0x4, scoped, tag = 'scoped memory for tpu_custom_call.1']
    #allocation4 [shape = 's32[1]{0}', space=sflag, size = 0x4, scoped, tag = 'scoped memory for tpu_custom_call.1']
    #allocation5 [shape = 'u8[163840]{0}', space=vmem, size = 0x28000, scoped, tag = 'input window, operand 1, single buffered']
    #allocation6 [shape = 's32[1]{0}', space=sflag, size = 0x4, scoped, tag = 'scoped memory for tpu_custom_call.1']
    #allocation7 [shape = 'u8[131072]{0}', space=vmem, size = 0x20000, scoped, tag = 'output window, operand 0, single buffered']
    %9 = vsyncpa [#allocation3], 0
    %10 = vsyncpa [#allocation6], 0
    %11 = vsyncpa [#allocation4], 0
    // Predicated region
    $region2: #{tpu_custom_call.1} parent=1 // pred_check
      _
    $region3: #{tpu_custom_call.1} parent=1 // pred_check_branch
      %13 = sbr.rel (0) target = $region5
    $region4: #{tpu_custom_call.1} parent=1 // pred_region
      %15 = vsyncadd [#allocation3], 0
      %s16 = sshll.u32 %s0, 4
      %s17 = int_to_ptr.hbm [resolvable:$true] %s16
      %s18 = sshll.u32 [#allocation2], 4
      %s19 = int_to_ptr.vmem [resolvable:$true] %s18
      %24 = dma.hbm_to_vmem [thread:$0]  %s17, 20480, %s19, [#allocation3], 320, 320, 20
    $region5: #{tpu_custom_call.1} parent=1 // pred_fallthru
      _
    // Predicated region
    $region6: #{tpu_custom_call.1} parent=1 // pred_check
      _
    $region7: #{tpu_custom_call.1} parent=1 // pred_check_branch
      %26 = sbr.rel (0) target = $region9
    $region8: #{tpu_custom_call.1} parent=1 // pred_region
      %28 = vsyncadd [#allocation6], 0
      %s29 = sshll.u32 %s1, 4
      %s30 = int_to_ptr.hbm [resolvable:$true] %s29
      %s31 = sshll.u32 [#allocation5], 4
      %s32 = int_to_ptr.vmem [resolvable:$true] %s31
      %37 = dma.hbm_to_vmem [thread:$0]  %s30, 5120, %s32, [#allocation6], 64, 64, 4
    $region9: #{tpu_custom_call.1} parent=1 // pred_fallthru
      _
    // Predicated region
    $region10: #{tpu_custom_call.1} parent=1 // pred_check
      _
    $region11: #{tpu_custom_call.1} parent=1 // pred_check_branch
      %39 = sbr.rel (0) target = $region13
    $region12: #{tpu_custom_call.1} parent=1 // pred_region
      _
    $region13: #{tpu_custom_call.1} parent=1 // pred_fallthru
      _
    // Predicated region
    $region14: #{tpu_custom_call.1} parent=1 // pred_check
      _
    $region15: #{tpu_custom_call.1} parent=1 // pred_check_branch
      %41 = sbr.rel (0) target = $region17
    $region16: #{tpu_custom_call.1} parent=1 // pred_region
      _
    $region17: #{tpu_custom_call.1} parent=1 // pred_fallthru
      _
    // Predicated region
    $region18: #{tpu_custom_call.1} parent=1 // pred_check
      _
    $region19: #{tpu_custom_call.1} parent=1 // pred_check_branch
      %43 = sbr.rel (0) target = $region21
    $region20: #{tpu_custom_call.1} parent=1 // pred_region
      %45 = dma.done [#allocation3], 20480
    $region21: #{tpu_custom_call.1} parent=1 // pred_fallthru
      _
    // Predicated region
    $region22: #{tpu_custom_call.1} parent=1 // pred_check
      _
    $region23: #{tpu_custom_call.1} parent=1 // pred_check_branch
      %47 = sbr.rel (0) target = $region25
    $region24: #{tpu_custom_call.1} parent=1 // pred_region
      %49 = dma.done [#allocation6], 5120
    $region25: #{tpu_custom_call.1} parent=1 // pred_fallthru
      _
    %v50 = vld [vmem:[#allocation2] sm:$0xff]
    %v51 = vld [vmem:[#allocation2 + $0x8] sm:$0xff]
    %v52 = vld [vmem:[#allocation2 + $0x10] sm:$0xf]
    %v53 = vld [vmem:[#allocation2 + $0x14] sm:$0xff]
    %v54 = vld [vmem:[#allocation2 + $0x1c] sm:$0xff]
    %v55 = vld [vmem:[#allocation2 + $0x24] sm:$0xf]
    %v56 = vld [vmem:[#allocation2 + $0x28] sm:$0xff]
    %v57 = vld [vmem:[#allocation2 + $0x30] sm:$0xff]
    %v58 = vld [vmem:[#allocation2 + $0x38] sm:$0xf]
    %v59 = vld [vmem:[#allocation2 + $0x3c] sm:$0xff]
    %v60 = vld [vmem:[#allocation2 + $0x44] sm:$0xff]
    %v61 = vld [vmem:[#allocation2 + $0x4c] sm:$0xf]
    %v62 = vld [vmem:[#allocation2 + $0x50] sm:$0xff]
    %v63 = vld [vmem:[#allocation2 + $0x58] sm:$0xff]
    %v64 = vld [vmem:[#allocation2 + $0x60] sm:$0xf]
    %v65 = vld [vmem:[#allocation2 + $0x64] sm:$0xff]
    %v66 = vld [vmem:[#allocation2 + $0x6c] sm:$0xff]
    %v67 = vld [vmem:[#allocation2 + $0x74] sm:$0xf]
    %v68 = vld [vmem:[#allocation2 + $0x78] sm:$0xff]
    %v69 = vld [vmem:[#allocation2 + $0x80] sm:$0xff]
    %v70 = vld [vmem:[#allocation2 + $0x88] sm:$0xf]
    %v71 = vld [vmem:[#allocation2 + $0x8c] sm:$0xff]
    %v72 = vld [vmem:[#allocation2 + $0x94] sm:$0xff]
    %v73 = vld [vmem:[#allocation2 + $0x9c] sm:$0xf]
    %v74 = vld [vmem:[#allocation2 + $0xa0] sm:$0xff]
    %v75 = vld [vmem:[#allocation2 + $0xa8] sm:$0xff]
    %v76 = vld [vmem:[#allocation2 + $0xb0] sm:$0xf]
    %v77 = vld [vmem:[#allocation2 + $0xb4] sm:$0xff]
    %v78 = vld [vmem:[#allocation2 + $0xbc] sm:$0xff]
    %v79 = vld [vmem:[#allocation2 + $0xc4] sm:$0xf]
    %v80 = vld [vmem:[#allocation2 + $0xc8] sm:$0xff]
    %v81 = vld [vmem:[#allocation2 + $0xd0] sm:$0xff]
    %v82 = vld [vmem:[#allocation2 + $0xd8] sm:$0xf]
    %v83 = vld [vmem:[#allocation2 + $0xdc] sm:$0xff]
    %v84 = vld [vmem:[#allocation2 + $0xe4] sm:$0xff]
    %v85 = vld [vmem:[#allocation2 + $0xec] sm:$0xf]
    %v86 = vld [vmem:[#allocation2 + $0xf0] sm:$0xff]
    %v87 = vld [vmem:[#allocation2 + $0xf8] sm:$0xff]
    %v88 = vld [vmem:[#allocation2 + $0x100] sm:$0xf]
    %v89 = vld [vmem:[#allocation2 + $0x104] sm:$0xff]
    %v90 = vld [vmem:[#allocation2 + $0x10c] sm:$0xff]
    %v91 = vld [vmem:[#allocation2 + $0x114] sm:$0xf]
    %v92 = vld [vmem:[#allocation2 + $0x118] sm:$0xff]
    %v93 = vld [vmem:[#allocation2 + $0x120] sm:$0xff]
    %v94 = vld [vmem:[#allocation2 + $0x128] sm:$0xf]
    %v95 = vld [vmem:[#allocation2 + $0x12c] sm:$0xff]
    %v96 = vld [vmem:[#allocation2 + $0x134] sm:$0xff]
    %v97 = vld [vmem:[#allocation2 + $0x13c] sm:$0xf]
    %v98 = vld [vmem:[#allocation2 + $0x140] sm:$0xff]
    %v99 = vld [vmem:[#allocation2 + $0x148] sm:$0xff]
    %v100 = vld [vmem:[#allocation2 + $0x150] sm:$0xf]
    %v101 = vld [vmem:[#allocation2 + $0x154] sm:$0xff]
    %v102 = vld [vmem:[#allocation2 + $0x15c] sm:$0xff]
    %v103 = vld [vmem:[#allocation2 + $0x164] sm:$0xf]
    %v104 = vld [vmem:[#allocation2 + $0x168] sm:$0xff]
    %v105 = vld [vmem:[#allocation2 + $0x170] sm:$0xff]
    %v106 = vld [vmem:[#allocation2 + $0x178] sm:$0xf]
    %v107 = vld [vmem:[#allocation2 + $0x17c] sm:$0xff]
    %v108 = vld [vmem:[#allocation2 + $0x184] sm:$0xff]
    %v109 = vld [vmem:[#allocation2 + $0x18c] sm:$0xf]
    %v110 = vld [vmem:[#allocation2 + $0x190] sm:$0xff]
    %v111 = vld [vmem:[#allocation2 + $0x198] sm:$0xff]
    %v112 = vld [vmem:[#allocation2 + $0x1a0] sm:$0xf]
    %v113 = vld [vmem:[#allocation2 + $0x1a4] sm:$0xff]
    %v114 = vld [vmem:[#allocation2 + $0x1ac] sm:$0xff]
    %v115 = vld [vmem:[#allocation2 + $0x1b4] sm:$0xf]
    %v116 = vld [vmem:[#allocation2 + $0x1b8] sm:$0xff]
    %v117 = vld [vmem:[#allocation2 + $0x1c0] sm:$0xff]
    %v118 = vld [vmem:[#allocation2 + $0x1c8] sm:$0xf]
    %v119 = vld [vmem:[#allocation2 + $0x1cc] sm:$0xff]
    %v120 = vld [vmem:[#allocation2 + $0x1d4] sm:$0xff]
    %v121 = vld [vmem:[#allocation2 + $0x1dc] sm:$0xf]
    %v122 = vld [vmem:[#allocation2 + $0x1e0] sm:$0xff]
    %v123 = vld [vmem:[#allocation2 + $0x1e8] sm:$0xff]
    %v124 = vld [vmem:[#allocation2 + $0x1f0] sm:$0xf]
    %v125 = vld [vmem:[#allocation2 + $0x1f4] sm:$0xff]
    %v126 = vld [vmem:[#allocation2 + $0x1fc] sm:$0xff]
    %v127 = vld [vmem:[#allocation2 + $0x204] sm:$0xf]
    %v128 = vld [vmem:[#allocation2 + $0x208] sm:$0xff]
    %v129 = vld [vmem:[#allocation2 + $0x210] sm:$0xff]
    %v130 = vld [vmem:[#allocation2 + $0x218] sm:$0xf]
    %v131 = vld [vmem:[#allocation2 + $0x21c] sm:$0xff]
    %v132 = vld [vmem:[#allocation2 + $0x224] sm:$0xff]
    %v133 = vld [vmem:[#allocation2 + $0x22c] sm:$0xf]
    %v134 = vld [vmem:[#allocation2 + $0x230] sm:$0xff]
    %v135 = vld [vmem:[#allocation2 + $0x238] sm:$0xff]
    %v136 = vld [vmem:[#allocation2 + $0x240] sm:$0xf]
    %v137 = vld [vmem:[#allocation2 + $0x244] sm:$0xff]
    %v138 = vld [vmem:[#allocation2 + $0x24c] sm:$0xff]
    %v139 = vld [vmem:[#allocation2 + $0x254] sm:$0xf]
    %v140 = vld [vmem:[#allocation2 + $0x258] sm:$0xff]
    %v141 = vld [vmem:[#allocation2 + $0x260] sm:$0xff]
    %v142 = vld [vmem:[#allocation2 + $0x268] sm:$0xf]
    %v143 = vld [vmem:[#allocation2 + $0x26c] sm:$0xff]
    %v144 = vld [vmem:[#allocation2 + $0x274] sm:$0xff]
    %v145 = vld [vmem:[#allocation2 + $0x27c] sm:$0xf]
    %v146 = vld [vmem:[#allocation2 + $0x280] sm:$0xff]
    %v147 = vld [vmem:[#allocation2 + $0x288] sm:$0xff]
    %v148 = vld [vmem:[#allocation2 + $0x290] sm:$0xf]
    %v149 = vld [vmem:[#allocation2 + $0x294] sm:$0xff]
    %v150 = vld [vmem:[#allocation2 + $0x29c] sm:$0xff]
    %v151 = vld [vmem:[#allocation2 + $0x2a4] sm:$0xf]
    %v152 = vld [vmem:[#allocation2 + $0x2a8] sm:$0xff]
    %v153 = vld [vmem:[#allocation2 + $0x2b0] sm:$0xff]
    %v154 = vld [vmem:[#allocation2 + $0x2b8] sm:$0xf]
    %v155 = vld [vmem:[#allocation2 + $0x2bc] sm:$0xff]
    %v156 = vld [vmem:[#allocation2 + $0x2c4] sm:$0xff]
    %v157 = vld [vmem:[#allocation2 + $0x2cc] sm:$0xf]
    %v158 = vld [vmem:[#allocation2 + $0x2d0] sm:$0xff]
    %v159 = vld [vmem:[#allocation2 + $0x2d8] sm:$0xff]
    %v160 = vld [vmem:[#allocation2 + $0x2e0] sm:$0xf]
    %v161 = vld [vmem:[#allocation2 + $0x2e4] sm:$0xff]
    %v162 = vld [vmem:[#allocation2 + $0x2ec] sm:$0xff]
    %v163 = vld [vmem:[#allocation2 + $0x2f4] sm:$0xf]
    %v164 = vld [vmem:[#allocation2 + $0x2f8] sm:$0xff]
    %v165 = vld [vmem:[#allocation2 + $0x300] sm:$0xff]
    %v166 = vld [vmem:[#allocation2 + $0x308] sm:$0xf]
    %v167 = vld [vmem:[#allocation2 + $0x30c] sm:$0xff]
    %v168 = vld [vmem:[#allocation2 + $0x314] sm:$0xff]
    %v169 = vld [vmem:[#allocation2 + $0x31c] sm:$0xf]
    %v170 = vld [vmem:[#allocation2 + $0x320] sm:$0xff]
    %v171 = vld [vmem:[#allocation2 + $0x328] sm:$0xff]
    %v172 = vld [vmem:[#allocation2 + $0x330] sm:$0xf]
    %v173 = vld [vmem:[#allocation2 + $0x334] sm:$0xff]
    %v174 = vld [vmem:[#allocation2 + $0x33c] sm:$0xff]
    %v175 = vld [vmem:[#allocation2 + $0x344] sm:$0xf]
    %v176 = vld [vmem:[#allocation2 + $0x348] sm:$0xff]
    %v177 = vld [vmem:[#allocation2 + $0x350] sm:$0xff]
    %v178 = vld [vmem:[#allocation2 + $0x358] sm:$0xf]
    %v179 = vld [vmem:[#allocation2 + $0x35c] sm:$0xff]
    %v180 = vld [vmem:[#allocation2 + $0x364] sm:$0xff]
    %v181 = vld [vmem:[#allocation2 + $0x36c] sm:$0xf]
    %v182 = vld [vmem:[#allocation2 + $0x370] sm:$0xff]
    %v183 = vld [vmem:[#allocation2 + $0x378] sm:$0xff]
    %v184 = vld [vmem:[#allocation2 + $0x380] sm:$0xf]
    %v185 = vld [vmem:[#allocation2 + $0x384] sm:$0xff]
    %v186 = vld [vmem:[#allocation2 + $0x38c] sm:$0xff]
    %v187 = vld [vmem:[#allocation2 + $0x394] sm:$0xf]
    %v188 = vld [vmem:[#allocation2 + $0x398] sm:$0xff]
    %v189 = vld [vmem:[#allocation2 + $0x3a0] sm:$0xff]
    %v190 = vld [vmem:[#allocation2 + $0x3a8] sm:$0xf]
    %v191 = vld [vmem:[#allocation2 + $0x3ac] sm:$0xff]
    %v192 = vld [vmem:[#allocation2 + $0x3b4] sm:$0xff]
    %v193 = vld [vmem:[#allocation2 + $0x3bc] sm:$0xf]
    %v194 = vld [vmem:[#allocation2 + $0x3c0] sm:$0xff]
    %v195 = vld [vmem:[#allocation2 + $0x3c8] sm:$0xff]
    %v196 = vld [vmem:[#allocation2 + $0x3d0] sm:$0xf]
    %v197 = vld [vmem:[#allocation2 + $0x3d4] sm:$0xff]
    %v198 = vld [vmem:[#allocation2 + $0x3dc] sm:$0xff]
    %v199 = vld [vmem:[#allocation2 + $0x3e4] sm:$0xf]
    %v200 = vld [vmem:[#allocation2 + $0x3e8] sm:$0xff]
    %v201 = vld [vmem:[#allocation2 + $0x3f0] sm:$0xff]
    %v202 = vld [vmem:[#allocation2 + $0x3f8] sm:$0xf]
    %v203 = vld [vmem:[#allocation2 + $0x3fc] sm:$0xff]
    %v204 = vld [vmem:[#allocation2 + $0x404] sm:$0xff]
    %v205 = vld [vmem:[#allocation2 + $0x40c] sm:$0xf]
    %v206 = vld [vmem:[#allocation2 + $0x410] sm:$0xff]
    %v207 = vld [vmem:[#allocation2 + $0x418] sm:$0xff]
    %v208 = vld [vmem:[#allocation2 + $0x420] sm:$0xf]
    %v209 = vld [vmem:[#allocation2 + $0x424] sm:$0xff]
    %v210 = vld [vmem:[#allocation2 + $0x42c] sm:$0xff]
    %v211 = vld [vmem:[#allocation2 + $0x434] sm:$0xf]
    %v212 = vld [vmem:[#allocation2 + $0x438] sm:$0xff]
    %v213 = vld [vmem:[#allocation2 + $0x440] sm:$0xff]
    %v214 = vld [vmem:[#allocation2 + $0x448] sm:$0xf]
    %v215 = vld [vmem:[#allocation2 + $0x44c] sm:$0xff]
    %v216 = vld [vmem:[#allocation2 + $0x454] sm:$0xff]
    %v217 = vld [vmem:[#allocation2 + $0x45c] sm:$0xf]
    %v218 = vld [vmem:[#allocation2 + $0x460] sm:$0xff]
    %v219 = vld [vmem:[#allocation2 + $0x468] sm:$0xff]
    %v220 = vld [vmem:[#allocation2 + $0x470] sm:$0xf]
    %v221 = vld [vmem:[#allocation2 + $0x474] sm:$0xff]
    %v222 = vld [vmem:[#allocation2 + $0x47c] sm:$0xff]
    %v223 = vld [vmem:[#allocation2 + $0x484] sm:$0xf]
    %v224 = vld [vmem:[#allocation2 + $0x488] sm:$0xff]
    %v225 = vld [vmem:[#allocation2 + $0x490] sm:$0xff]
    %v226 = vld [vmem:[#allocation2 + $0x498] sm:$0xf]
    %v227 = vld [vmem:[#allocation2 + $0x49c] sm:$0xff]
    %v228 = vld [vmem:[#allocation2 + $0x4a4] sm:$0xff]
    %v229 = vld [vmem:[#allocation2 + $0x4ac] sm:$0xf]
    %v230 = vld [vmem:[#allocation2 + $0x4b0] sm:$0xff]
    %v231 = vld [vmem:[#allocation2 + $0x4b8] sm:$0xff]
    %v232 = vld [vmem:[#allocation2 + $0x4c0] sm:$0xf]
    %v233 = vld [vmem:[#allocation2 + $0x4c4] sm:$0xff]
    %v234 = vld [vmem:[#allocation2 + $0x4cc] sm:$0xff]
    %v235 = vld [vmem:[#allocation2 + $0x4d4] sm:$0xf]
    %v236 = vld [vmem:[#allocation2 + $0x4d8] sm:$0xff]
    %v237 = vld [vmem:[#allocation2 + $0x4e0] sm:$0xff]
    %v238 = vld [vmem:[#allocation2 + $0x4e8] sm:$0xf]
    %v239 = vld [vmem:[#allocation2 + $0x4ec] sm:$0xff]
    %v240 = vld [vmem:[#allocation2 + $0x4f4] sm:$0xff]
    %v241 = vld [vmem:[#allocation2 + $0x4fc] sm:$0xf]
    %v242 = vld [vmem:[#allocation5] sm:$0xf]
    %v243 = vld [vmem:[#allocation5 + $0x4] sm:$0xf]
    %v244 = vld [vmem:[#allocation5 + $0x8] sm:$0xf]
    %v245 = vld [vmem:[#allocation5 + $0xc] sm:$0xf]
    %v246 = vld [vmem:[#allocation5 + $0x10] sm:$0xf]
    %v247 = vld [vmem:[#allocation5 + $0x14] sm:$0xf]
    %v248 = vld [vmem:[#allocation5 + $0x18] sm:$0xf]
    %v249 = vld [vmem:[#allocation5 + $0x1c] sm:$0xf]
    %v250 = vld [vmem:[#allocation5 + $0x20] sm:$0xf]
    %v251 = vld [vmem:[#allocation5 + $0x24] sm:$0xf]
    %v252 = vld [vmem:[#allocation5 + $0x28] sm:$0xf]
    %v253 = vld [vmem:[#allocation5 + $0x2c] sm:$0xf]
    %v254 = vld [vmem:[#allocation5 + $0x30] sm:$0xf]
    %v255 = vld [vmem:[#allocation5 + $0x34] sm:$0xf]
    %v256 = vld [vmem:[#allocation5 + $0x38] sm:$0xf]
    %v257 = vld [vmem:[#allocation5 + $0x3c] sm:$0xf]
    %v258 = vld [vmem:[#allocation5 + $0x40] sm:$0xf]
    %v259 = vld [vmem:[#allocation5 + $0x44] sm:$0xf]
    %v260 = vld [vmem:[#allocation5 + $0x48] sm:$0xf]
    %v261 = vld [vmem:[#allocation5 + $0x4c] sm:$0xf]
    %v262 = vld [vmem:[#allocation5 + $0x50] sm:$0xf]
    %v263 = vld [vmem:[#allocation5 + $0x54] sm:$0xf]
    %v264 = vld [vmem:[#allocation5 + $0x58] sm:$0xf]
    %v265 = vld [vmem:[#allocation5 + $0x5c] sm:$0xf]
    %v266 = vld [vmem:[#allocation5 + $0x60] sm:$0xf]
    %v267 = vld [vmem:[#allocation5 + $0x64] sm:$0xf]
    %v268 = vld [vmem:[#allocation5 + $0x68] sm:$0xf]
    %v269 = vld [vmem:[#allocation5 + $0x6c] sm:$0xf]
    %v270 = vld [vmem:[#allocation5 + $0x70] sm:$0xf]
    %v271 = vld [vmem:[#allocation5 + $0x74] sm:$0xf]
    %v272 = vld [vmem:[#allocation5 + $0x78] sm:$0xf]
    %v273 = vld [vmem:[#allocation5 + $0x7c] sm:$0xf]
    %v274 = vld [vmem:[#allocation5 + $0x80] sm:$0xf]
    %v275 = vld [vmem:[#allocation5 + $0x84] sm:$0xf]
    %v276 = vld [vmem:[#allocation5 + $0x88] sm:$0xf]
    %v277 = vld [vmem:[#allocation5 + $0x8c] sm:$0xf]
    %v278 = vld [vmem:[#allocation5 + $0x90] sm:$0xf]
    %v279 = vld [vmem:[#allocation5 + $0x94] sm:$0xf]
    %v280 = vld [vmem:[#allocation5 + $0x98] sm:$0xf]
    %v281 = vld [vmem:[#allocation5 + $0x9c] sm:$0xf]
    %v282 = vld [vmem:[#allocation5 + $0xa0] sm:$0xf]
    %v283 = vld [vmem:[#allocation5 + $0xa4] sm:$0xf]
    %v284 = vld [vmem:[#allocation5 + $0xa8] sm:$0xf]
    %v285 = vld [vmem:[#allocation5 + $0xac] sm:$0xf]
    %v286 = vld [vmem:[#allocation5 + $0xb0] sm:$0xf]
    %v287 = vld [vmem:[#allocation5 + $0xb4] sm:$0xf]
    %v288 = vld [vmem:[#allocation5 + $0xb8] sm:$0xf]
    %v289 = vld [vmem:[#allocation5 + $0xbc] sm:$0xf]
    %v290 = vld [vmem:[#allocation5 + $0xc0] sm:$0xf]
    %v291 = vld [vmem:[#allocation5 + $0xc4] sm:$0xf]
    %v292 = vld [vmem:[#allocation5 + $0xc8] sm:$0xf]
    %v293 = vld [vmem:[#allocation5 + $0xcc] sm:$0xf]
    %v294 = vld [vmem:[#allocation5 + $0xd0] sm:$0xf]
    %v295 = vld [vmem:[#allocation5 + $0xd4] sm:$0xf]
    %v296 = vld [vmem:[#allocation5 + $0xd8] sm:$0xf]
    %v297 = vld [vmem:[#allocation5 + $0xdc] sm:$0xf]
    %v298 = vld [vmem:[#allocation5 + $0xe0] sm:$0xf]
    %v299 = vld [vmem:[#allocation5 + $0xe4] sm:$0xf]
    %v300 = vld [vmem:[#allocation5 + $0xe8] sm:$0xf]
    %v301 = vld [vmem:[#allocation5 + $0xec] sm:$0xf]
    %v302 = vld [vmem:[#allocation5 + $0xf0] sm:$0xf]
    %v303 = vld [vmem:[#allocation5 + $0xf4] sm:$0xf]
    %v304 = vld [vmem:[#allocation5 + $0xf8] sm:$0xf]
    %v305 = vld [vmem:[#allocation5 + $0xfc] sm:$0xf]
    %v306 = vld [vmem:[#allocation5 + $0x100] sm:$0xf]
    %v307 = vld [vmem:[#allocation5 + $0x104] sm:$0xf]
    %v308 = vld [vmem:[#allocation5 + $0x108] sm:$0xf]
    %v309 = vld [vmem:[#allocation5 + $0x10c] sm:$0xf]
    %v310 = vld [vmem:[#allocation5 + $0x110] sm:$0xf]
    %v311 = vld [vmem:[#allocation5 + $0x114] sm:$0xf]
    %v312 = vld [vmem:[#allocation5 + $0x118] sm:$0xf]
    %v313 = vld [vmem:[#allocation5 + $0x11c] sm:$0xf]
    %v314 = vld [vmem:[#allocation5 + $0x120] sm:$0xf]
    %v315 = vld [vmem:[#allocation5 + $0x124] sm:$0xf]
    %v316 = vld [vmem:[#allocation5 + $0x128] sm:$0xf]
    %v317 = vld [vmem:[#allocation5 + $0x12c] sm:$0xf]
    %v318 = vld [vmem:[#allocation5 + $0x130] sm:$0xf]
    %v319 = vld [vmem:[#allocation5 + $0x134] sm:$0xf]
    %v320 = vld [vmem:[#allocation5 + $0x138] sm:$0xf]
    %v321 = vld [vmem:[#allocation5 + $0x13c] sm:$0xf]
    %v514 = vunpack.c.l.b16 %v50
    %v515 = vunpack.c.h.b16 %v50
    %v516 = vunpack.c.l.b16 %v51
    %v517 = vunpack.c.h.b16 %v51
    %v518 = vunpack.c.l.b16 %v52
    %v519 = vunpack.c.l.b16 %v53
    %v520 = vunpack.c.h.b16 %v53
    %v521 = vunpack.c.l.b16 %v54
    %v522 = vunpack.c.h.b16 %v54
    %v523 = vunpack.c.l.b16 %v55
    %v524 = vunpack.c.l.b16 %v56
    %v525 = vunpack.c.h.b16 %v56
    %v526 = vunpack.c.l.b16 %v57
    %v527 = vunpack.c.h.b16 %v57
    %v528 = vunpack.c.l.b16 %v58
    %v529 = vunpack.c.l.b16 %v59
    %v530 = vunpack.c.h.b16 %v59
    %v531 = vunpack.c.l.b16 %v60
    %v532 = vunpack.c.h.b16 %v60
    %v533 = vunpack.c.l.b16 %v61
    %v534 = vunpack.c.l.b16 %v62
    %v535 = vunpack.c.h.b16 %v62
    %v536 = vunpack.c.l.b16 %v63
    %v537 = vunpack.c.h.b16 %v63
    %v538 = vunpack.c.l.b16 %v64
    %v539 = vunpack.c.l.b16 %v65
    %v540 = vunpack.c.h.b16 %v65
    %v541 = vunpack.c.l.b16 %v66
    %v542 = vunpack.c.h.b16 %v66
    %v543 = vunpack.c.l.b16 %v67
    %v544 = vunpack.c.l.b16 %v68
    %v545 = vunpack.c.h.b16 %v68
    %v546 = vunpack.c.l.b16 %v69
    %v547 = vunpack.c.h.b16 %v69
    %v548 = vunpack.c.l.b16 %v70
    %v549 = vunpack.c.l.b16 %v71
    %v550 = vunpack.c.h.b16 %v71
    %v551 = vunpack.c.l.b16 %v72
    %v552 = vunpack.c.h.b16 %v72
    %v553 = vunpack.c.l.b16 %v73
    %v554 = vunpack.c.l.b16 %v74
    %v555 = vunpack.c.h.b16 %v74
    %v556 = vunpack.c.l.b16 %v75
    %v557 = vunpack.c.h.b16 %v75
    %v558 = vunpack.c.l.b16 %v76
    %v559 = vunpack.c.l.b16 %v77
    %v560 = vunpack.c.h.b16 %v77
    %v561 = vunpack.c.l.b16 %v78
    %v562 = vunpack.c.h.b16 %v78
    %v563 = vunpack.c.l.b16 %v79
    %v564 = vunpack.c.l.b16 %v80
    %v565 = vunpack.c.h.b16 %v80
    %v566 = vunpack.c.l.b16 %v81
    %v567 = vunpack.c.h.b16 %v81
    %v568 = vunpack.c.l.b16 %v82
    %v569 = vunpack.c.l.b16 %v83
    %v570 = vunpack.c.h.b16 %v83
    %v571 = vunpack.c.l.b16 %v84
    %v572 = vunpack.c.h.b16 %v84
    %v573 = vunpack.c.l.b16 %v85
    %v574 = vunpack.c.l.b16 %v86
    %v575 = vunpack.c.h.b16 %v86
    %v576 = vunpack.c.l.b16 %v87
    %v577 = vunpack.c.h.b16 %v87
    %v578 = vunpack.c.l.b16 %v88
    %v579 = vunpack.c.l.b16 %v89
    %v580 = vunpack.c.h.b16 %v89
    %v581 = vunpack.c.l.b16 %v90
    %v582 = vunpack.c.h.b16 %v90
    %v583 = vunpack.c.l.b16 %v91
    %v584 = vunpack.c.l.b16 %v92
    %v585 = vunpack.c.h.b16 %v92
    %v586 = vunpack.c.l.b16 %v93
    %v587 = vunpack.c.h.b16 %v93
    %v588 = vunpack.c.l.b16 %v94
    %v589 = vunpack.c.l.b16 %v95
    %v590 = vunpack.c.h.b16 %v95
    %v591 = vunpack.c.l.b16 %v96
    %v592 = vunpack.c.h.b16 %v96
    %v593 = vunpack.c.l.b16 %v97
    %v594 = vunpack.c.l.b16 %v98
    %v595 = vunpack.c.h.b16 %v98
    %v596 = vunpack.c.l.b16 %v99
    %v597 = vunpack.c.h.b16 %v99
    %v598 = vunpack.c.l.b16 %v100
    %v599 = vunpack.c.l.b16 %v101
    %v600 = vunpack.c.h.b16 %v101
    %v601 = vunpack.c.l.b16 %v102
    %v602 = vunpack.c.h.b16 %v102
    %v603 = vunpack.c.l.b16 %v103
    %v604 = vunpack.c.l.b16 %v104
    %v605 = vunpack.c.h.b16 %v104
    %v606 = vunpack.c.l.b16 %v105
    %v607 = vunpack.c.h.b16 %v105
    %v608 = vunpack.c.l.b16 %v106
    %v609 = vunpack.c.l.b16 %v107
    %v610 = vunpack.c.h.b16 %v107
    %v611 = vunpack.c.l.b16 %v108
    %v612 = vunpack.c.h.b16 %v108
    %v613 = vunpack.c.l.b16 %v109
    %v614 = vunpack.c.l.b16 %v110
    %v615 = vunpack.c.h.b16 %v110
    %v616 = vunpack.c.l.b16 %v111
    %v617 = vunpack.c.h.b16 %v111
    %v618 = vunpack.c.l.b16 %v112
    %v619 = vunpack.c.l.b16 %v113
    %v620 = vunpack.c.h.b16 %v113
    %v621 = vunpack.c.l.b16 %v114
    %v622 = vunpack.c.h.b16 %v114
    %v623 = vunpack.c.l.b16 %v115
    %v624 = vunpack.c.l.b16 %v116
    %v625 = vunpack.c.h.b16 %v116
    %v626 = vunpack.c.l.b16 %v117
    %v627 = vunpack.c.h.b16 %v117
    %v628 = vunpack.c.l.b16 %v118
    %v629 = vunpack.c.l.b16 %v119
    %v630 = vunpack.c.h.b16 %v119
    %v631 = vunpack.c.l.b16 %v120
    %v632 = vunpack.c.h.b16 %v120
    %v633 = vunpack.c.l.b16 %v121
    %v634 = vunpack.c.l.b16 %v122
    %v635 = vunpack.c.h.b16 %v122
    %v636 = vunpack.c.l.b16 %v123
    %v637 = vunpack.c.h.b16 %v123
    %v638 = vunpack.c.l.b16 %v124
    %v639 = vunpack.c.l.b16 %v125
    %v640 = vunpack.c.h.b16 %v125
    %v641 = vunpack.c.l.b16 %v126
    %v642 = vunpack.c.h.b16 %v126
    %v643 = vunpack.c.l.b16 %v127
    %v644 = vunpack.c.l.b16 %v128
    %v645 = vunpack.c.h.b16 %v128
    %v646 = vunpack.c.l.b16 %v129
    %v647 = vunpack.c.h.b16 %v129
    %v648 = vunpack.c.l.b16 %v130
    %v649 = vunpack.c.l.b16 %v131
    %v650 = vunpack.c.h.b16 %v131
    %v651 = vunpack.c.l.b16 %v132
    %v652 = vunpack.c.h.b16 %v132
    %v653 = vunpack.c.l.b16 %v133
    %v654 = vunpack.c.l.b16 %v134
    %v655 = vunpack.c.h.b16 %v134
    %v656 = vunpack.c.l.b16 %v135
    %v657 = vunpack.c.h.b16 %v135
    %v658 = vunpack.c.l.b16 %v136
    %v659 = vunpack.c.l.b16 %v137
    %v660 = vunpack.c.h.b16 %v137
    %v661 = vunpack.c.l.b16 %v138
    %v662 = vunpack.c.h.b16 %v138
    %v663 = vunpack.c.l.b16 %v139
    %v664 = vunpack.c.l.b16 %v140
    %v665 = vunpack.c.h.b16 %v140
    %v666 = vunpack.c.l.b16 %v141
    %v667 = vunpack.c.h.b16 %v141
    %v668 = vunpack.c.l.b16 %v142
    %v669 = vunpack.c.l.b16 %v143
    %v670 = vunpack.c.h.b16 %v143
    %v671 = vunpack.c.l.b16 %v144
    %v672 = vunpack.c.h.b16 %v144
    %v673 = vunpack.c.l.b16 %v145
    %v674 = vunpack.c.l.b16 %v146
    %v675 = vunpack.c.h.b16 %v146
    %v676 = vunpack.c.l.b16 %v147
    %v677 = vunpack.c.h.b16 %v147
    %v678 = vunpack.c.l.b16 %v148
    %v679 = vunpack.c.l.b16 %v149
    %v680 = vunpack.c.h.b16 %v149
    %v681 = vunpack.c.l.b16 %v150
    %v682 = vunpack.c.h.b16 %v150
    %v683 = vunpack.c.l.b16 %v151
    %v684 = vunpack.c.l.b16 %v152
    %v685 = vunpack.c.h.b16 %v152
    %v686 = vunpack.c.l.b16 %v153
    %v687 = vunpack.c.h.b16 %v153
    %v688 = vunpack.c.l.b16 %v154
    %v689 = vunpack.c.l.b16 %v155
    %v690 = vunpack.c.h.b16 %v155
    %v691 = vunpack.c.l.b16 %v156
    %v692 = vunpack.c.h.b16 %v156
    %v693 = vunpack.c.l.b16 %v157
    %v694 = vunpack.c.l.b16 %v158
    %v695 = vunpack.c.h.b16 %v158
    %v696 = vunpack.c.l.b16 %v159
    %v697 = vunpack.c.h.b16 %v159
    %v698 = vunpack.c.l.b16 %v160
    %v699 = vunpack.c.l.b16 %v161
    %v700 = vunpack.c.h.b16 %v161
    %v701 = vunpack.c.l.b16 %v162
    %v702 = vunpack.c.h.b16 %v162
    %v703 = vunpack.c.l.b16 %v163
    %v704 = vunpack.c.l.b16 %v164
    %v705 = vunpack.c.h.b16 %v164
    %v706 = vunpack.c.l.b16 %v165
    %v707 = vunpack.c.h.b16 %v165
    %v708 = vunpack.c.l.b16 %v166
    %v709 = vunpack.c.l.b16 %v167
    %v710 = vunpack.c.h.b16 %v167
    %v711 = vunpack.c.l.b16 %v168
    %v712 = vunpack.c.h.b16 %v168
    %v713 = vunpack.c.l.b16 %v169
    %v714 = vunpack.c.l.b16 %v170
    %v715 = vunpack.c.h.b16 %v170
    %v716 = vunpack.c.l.b16 %v171
    %v717 = vunpack.c.h.b16 %v171
    %v718 = vunpack.c.l.b16 %v172
    %v719 = vunpack.c.l.b16 %v173
    %v720 = vunpack.c.h.b16 %v173
    %v721 = vunpack.c.l.b16 %v174
    %v722 = vunpack.c.h.b16 %v174
    %v723 = vunpack.c.l.b16 %v175
    %v724 = vunpack.c.l.b16 %v176
    %v725 = vunpack.c.h.b16 %v176
    %v726 = vunpack.c.l.b16 %v177
    %v727 = vunpack.c.h.b16 %v177
    %v728 = vunpack.c.l.b16 %v178
    %v729 = vunpack.c.l.b16 %v179
    %v730 = vunpack.c.h.b16 %v179
    %v731 = vunpack.c.l.b16 %v180
    %v732 = vunpack.c.h.b16 %v180
    %v733 = vunpack.c.l.b16 %v181
    %v734 = vunpack.c.l.b16 %v182
    %v735 = vunpack.c.h.b16 %v182
    %v736 = vunpack.c.l.b16 %v183
    %v737 = vunpack.c.h.b16 %v183
    %v738 = vunpack.c.l.b16 %v184
    %v739 = vunpack.c.l.b16 %v185
    %v740 = vunpack.c.h.b16 %v185
    %v741 = vunpack.c.l.b16 %v186
    %v742 = vunpack.c.h.b16 %v186
    %v743 = vunpack.c.l.b16 %v187
    %v744 = vunpack.c.l.b16 %v188
    %v745 = vunpack.c.h.b16 %v188
    %v746 = vunpack.c.l.b16 %v189
    %v747 = vunpack.c.h.b16 %v189
    %v748 = vunpack.c.l.b16 %v190
    %v749 = vunpack.c.l.b16 %v191
    %v750 = vunpack.c.h.b16 %v191
    %v751 = vunpack.c.l.b16 %v192
    %v752 = vunpack.c.h.b16 %v192
    %v753 = vunpack.c.l.b16 %v193
    %v754 = vunpack.c.l.b16 %v194
    %v755 = vunpack.c.h.b16 %v194
    %v756 = vunpack.c.l.b16 %v195
    %v757 = vunpack.c.h.b16 %v195
    %v758 = vunpack.c.l.b16 %v196
    %v759 = vunpack.c.l.b16 %v197
    %v760 = vunpack.c.h.b16 %v197
    %v761 = vunpack.c.l.b16 %v198
    %v762 = vunpack.c.h.b16 %v198
    %v763 = vunpack.c.l.b16 %v199
    %v764 = vunpack.c.l.b16 %v200
    %v765 = vunpack.c.h.b16 %v200
    %v766 = vunpack.c.l.b16 %v201
    %v767 = vunpack.c.h.b16 %v201
    %v768 = vunpack.c.l.b16 %v202
    %v769 = vunpack.c.l.b16 %v203
    %v770 = vunpack.c.h.b16 %v203
    %v771 = vunpack.c.l.b16 %v204
    %v772 = vunpack.c.h.b16 %v204
    %v773 = vunpack.c.l.b16 %v205
    %v774 = vunpack.c.l.b16 %v206
    %v775 = vunpack.c.h.b16 %v206
    %v776 = vunpack.c.l.b16 %v207
    %v777 = vunpack.c.h.b16 %v207
    %v778 = vunpack.c.l.b16 %v208
    %v779 = vunpack.c.l.b16 %v209
    %v780 = vunpack.c.h.b16 %v209
    %v781 = vunpack.c.l.b16 %v210
    %v782 = vunpack.c.h.b16 %v210
    %v783 = vunpack.c.l.b16 %v211
    %v784 = vunpack.c.l.b16 %v212
    %v785 = vunpack.c.h.b16 %v212
    %v786 = vunpack.c.l.b16 %v213
    %v787 = vunpack.c.h.b16 %v213
    %v788 = vunpack.c.l.b16 %v214
    %v789 = vunpack.c.l.b16 %v215
    %v790 = vunpack.c.h.b16 %v215
    %v791 = vunpack.c.l.b16 %v216
    %v792 = vunpack.c.h.b16 %v216
    %v793 = vunpack.c.l.b16 %v217
    %v794 = vunpack.c.l.b16 %v218
    %v795 = vunpack.c.h.b16 %v218
    %v796 = vunpack.c.l.b16 %v219
    %v797 = vunpack.c.h.b16 %v219
    %v798 = vunpack.c.l.b16 %v220
    %v799 = vunpack.c.l.b16 %v221
    %v800 = vunpack.c.h.b16 %v221
    %v801 = vunpack.c.l.b16 %v222
    %v802 = vunpack.c.h.b16 %v222
    %v803 = vunpack.c.l.b16 %v223
    %v804 = vunpack.c.l.b16 %v224
    %v805 = vunpack.c.h.b16 %v224
    %v806 = vunpack.c.l.b16 %v225
    %v807 = vunpack.c.h.b16 %v225
    %v808 = vunpack.c.l.b16 %v226
    %v809 = vunpack.c.l.b16 %v227
    %v810 = vunpack.c.h.b16 %v227
    %v811 = vunpack.c.l.b16 %v228
    %v812 = vunpack.c.h.b16 %v228
    %v813 = vunpack.c.l.b16 %v229
    %v814 = vunpack.c.l.b16 %v230
    %v815 = vunpack.c.h.b16 %v230
    %v816 = vunpack.c.l.b16 %v231
    %v817 = vunpack.c.h.b16 %v231
    %v818 = vunpack.c.l.b16 %v232
    %v819 = vunpack.c.l.b16 %v233
    %v820 = vunpack.c.h.b16 %v233
    %v821 = vunpack.c.l.b16 %v234
    %v822 = vunpack.c.h.b16 %v234
    %v823 = vunpack.c.l.b16 %v235
    %v824 = vunpack.c.l.b16 %v236
    %v825 = vunpack.c.h.b16 %v236
    %v826 = vunpack.c.l.b16 %v237
    %v827 = vunpack.c.h.b16 %v237
    %v828 = vunpack.c.l.b16 %v238
    %v829 = vunpack.c.l.b16 %v239
    %v830 = vunpack.c.h.b16 %v239
    %v831 = vunpack.c.l.b16 %v240
    %v832 = vunpack.c.h.b16 %v240
    %v833 = vunpack.c.l.b16 %v241
    %v834 = vpack.c.b16 %v519, %v514
    %v835 = vpack.c.b16 %v520, %v515
    %v836 = vpack.c.b16 %v521, %v516
    %v837 = vpack.c.b16 %v522, %v517
    %v838 = vpack.c.b16 %v523, %v518
    %v839 = vpack.c.b16 %v529, %v524
    %v840 = vpack.c.b16 %v530, %v525
    %v841 = vpack.c.b16 %v531, %v526
    %v842 = vpack.c.b16 %v532, %v527
    %v843 = vpack.c.b16 %v533, %v528
    %v844 = vpack.c.b16 %v539, %v534
    %v845 = vpack.c.b16 %v540, %v535
    %v846 = vpack.c.b16 %v541, %v536
    %v847 = vpack.c.b16 %v542, %v537
    %v848 = vpack.c.b16 %v543, %v538
    %v849 = vpack.c.b16 %v549, %v544
    %v850 = vpack.c.b16 %v550, %v545
    %v851 = vpack.c.b16 %v551, %v546
    %v852 = vpack.c.b16 %v552, %v547
    %v853 = vpack.c.b16 %v553, %v548
    %v854 = vpack.c.b16 %v559, %v554
    %v855 = vpack.c.b16 %v560, %v555
    %v856 = vpack.c.b16 %v561, %v556
    %v857 = vpack.c.b16 %v562, %v557
    %v858 = vpack.c.b16 %v563, %v558
    %v859 = vpack.c.b16 %v569, %v564
    %v860 = vpack.c.b16 %v570, %v565
    %v861 = vpack.c.b16 %v571, %v566
    %v862 = vpack.c.b16 %v572, %v567
    %v863 = vpack.c.b16 %v573, %v568
    %v864 = vpack.c.b16 %v579, %v574
    %v865 = vpack.c.b16 %v580, %v575
    %v866 = vpack.c.b16 %v581, %v576
    %v867 = vpack.c.b16 %v582, %v577
    %v868 = vpack.c.b16 %v583, %v578
    %v869 = vpack.c.b16 %v589, %v584
    %v870 = vpack.c.b16 %v590, %v585
    %v871 = vpack.c.b16 %v591, %v586
    %v872 = vpack.c.b16 %v592, %v587
    %v873 = vpack.c.b16 %v593, %v588
    %v874 = vpack.c.b16 %v599, %v594
    %v875 = vpack.c.b16 %v600, %v595
    %v876 = vpack.c.b16 %v601, %v596
    %v877 = vpack.c.b16 %v602, %v597
    %v878 = vpack.c.b16 %v603, %v598
    %v879 = vpack.c.b16 %v609, %v604
    %v880 = vpack.c.b16 %v610, %v605
    %v881 = vpack.c.b16 %v611, %v606
    %v882 = vpack.c.b16 %v612, %v607
    %v883 = vpack.c.b16 %v613, %v608
    %v884 = vpack.c.b16 %v619, %v614
    %v885 = vpack.c.b16 %v620, %v615
    %v886 = vpack.c.b16 %v621, %v616
    %v887 = vpack.c.b16 %v622, %v617
    %v888 = vpack.c.b16 %v623, %v618
    %v889 = vpack.c.b16 %v629, %v624
    %v890 = vpack.c.b16 %v630, %v625
    %v891 = vpack.c.b16 %v631, %v626
    %v892 = vpack.c.b16 %v632, %v627
    %v893 = vpack.c.b16 %v633, %v628
    %v894 = vpack.c.b16 %v639, %v634
    %v895 = vpack.c.b16 %v640, %v635
    %v896 = vpack.c.b16 %v641, %v636
    %v897 = vpack.c.b16 %v642, %v637
    %v898 = vpack.c.b16 %v643, %v638
    %v899 = vpack.c.b16 %v649, %v644
    %v900 = vpack.c.b16 %v650, %v645
    %v901 = vpack.c.b16 %v651, %v646
    %v902 = vpack.c.b16 %v652, %v647
    %v903 = vpack.c.b16 %v653, %v648
    %v904 = vpack.c.b16 %v659, %v654
    %v905 = vpack.c.b16 %v660, %v655
    %v906 = vpack.c.b16 %v661, %v656
    %v907 = vpack.c.b16 %v662, %v657
    %v908 = vpack.c.b16 %v663, %v658
    %v909 = vpack.c.b16 %v669, %v664
    %v910 = vpack.c.b16 %v670, %v665
    %v911 = vpack.c.b16 %v671, %v666
    %v912 = vpack.c.b16 %v672, %v667
    %v913 = vpack.c.b16 %v673, %v668
    %v914 = vpack.c.b16 %v679, %v674
    %v915 = vpack.c.b16 %v680, %v675
    %v916 = vpack.c.b16 %v681, %v676
    %v917 = vpack.c.b16 %v682, %v677
    %v918 = vpack.c.b16 %v683, %v678
    %v919 = vpack.c.b16 %v689, %v684
    %v920 = vpack.c.b16 %v690, %v685
    %v921 = vpack.c.b16 %v691, %v686
    %v922 = vpack.c.b16 %v692, %v687
    %v923 = vpack.c.b16 %v693, %v688
    %v924 = vpack.c.b16 %v699, %v694
    %v925 = vpack.c.b16 %v700, %v695
    %v926 = vpack.c.b16 %v701, %v696
    %v927 = vpack.c.b16 %v702, %v697
    %v928 = vpack.c.b16 %v703, %v698
    %v929 = vpack.c.b16 %v709, %v704
    %v930 = vpack.c.b16 %v710, %v705
    %v931 = vpack.c.b16 %v711, %v706
    %v932 = vpack.c.b16 %v712, %v707
    %v933 = vpack.c.b16 %v713, %v708
    %v934 = vpack.c.b16 %v719, %v714
    %v935 = vpack.c.b16 %v720, %v715
    %v936 = vpack.c.b16 %v721, %v716
    %v937 = vpack.c.b16 %v722, %v717
    %v938 = vpack.c.b16 %v723, %v718
    %v939 = vpack.c.b16 %v729, %v724
    %v940 = vpack.c.b16 %v730, %v725
    %v941 = vpack.c.b16 %v731, %v726
    %v942 = vpack.c.b16 %v732, %v727
    %v943 = vpack.c.b16 %v733, %v728
    %v944 = vpack.c.b16 %v739, %v734
    %v945 = vpack.c.b16 %v740, %v735
    %v946 = vpack.c.b16 %v741, %v736
    %v947 = vpack.c.b16 %v742, %v737
    %v948 = vpack.c.b16 %v743, %v738
    %v949 = vpack.c.b16 %v749, %v744
    %v950 = vpack.c.b16 %v750, %v745
    %v951 = vpack.c.b16 %v751, %v746
    %v952 = vpack.c.b16 %v752, %v747
    %v953 = vpack.c.b16 %v753, %v748
    %v954 = vpack.c.b16 %v759, %v754
    %v955 = vpack.c.b16 %v760, %v755
    %v956 = vpack.c.b16 %v761, %v756
    %v957 = vpack.c.b16 %v762, %v757
    %v958 = vpack.c.b16 %v763, %v758
    %v959 = vpack.c.b16 %v769, %v764
    %v960 = vpack.c.b16 %v770, %v765
    %v961 = vpack.c.b16 %v771, %v766
    %v962 = vpack.c.b16 %v772, %v767
    %v963 = vpack.c.b16 %v773, %v768
    %v964 = vpack.c.b16 %v779, %v774
    %v965 = vpack.c.b16 %v780, %v775
    %v966 = vpack.c.b16 %v781, %v776
    %v967 = vpack.c.b16 %v782, %v777
    %v968 = vpack.c.b16 %v783, %v778
    %v969 = vpack.c.b16 %v789, %v784
    %v970 = vpack.c.b16 %v790, %v785
    %v971 = vpack.c.b16 %v791, %v786
    %v972 = vpack.c.b16 %v792, %v787
    %v973 = vpack.c.b16 %v793, %v788
    %v974 = vpack.c.b16 %v799, %v794
    %v975 = vpack.c.b16 %v800, %v795
    %v976 = vpack.c.b16 %v801, %v796
    %v977 = vpack.c.b16 %v802, %v797
    %v978 = vpack.c.b16 %v803, %v798
    %v979 = vpack.c.b16 %v809, %v804
    %v980 = vpack.c.b16 %v810, %v805
    %v981 = vpack.c.b16 %v811, %v806
    %v982 = vpack.c.b16 %v812, %v807
    %v983 = vpack.c.b16 %v813, %v808
    %v984 = vpack.c.b16 %v819, %v814
    %v985 = vpack.c.b16 %v820, %v815
    %v986 = vpack.c.b16 %v821, %v816
    %v987 = vpack.c.b16 %v822, %v817
    %v988 = vpack.c.b16 %v823, %v818
    %v989 = vpack.c.b16 %v829, %v824
    %v990 = vpack.c.b16 %v830, %v825
    %v991 = vpack.c.b16 %v831, %v826
    %v992 = vpack.c.b16 %v832, %v827
    %v993 = vpack.c.b16 %v833, %v828
    %v1234 = vunpack.c.l.b16 %v242
    %v1235 = vunpack.c.l.b16 %v243
    %v1236 = vunpack.c.l.b16 %v244
    %v1237 = vunpack.c.l.b16 %v245
    %v1238 = vunpack.c.l.b16 %v246
    %v1239 = vunpack.c.l.b16 %v247
    %v1240 = vunpack.c.l.b16 %v248
    %v1241 = vunpack.c.l.b16 %v249
    %v1242 = vunpack.c.l.b16 %v250
    %v1243 = vunpack.c.l.b16 %v251
    %v1244 = vunpack.c.l.b16 %v252
    %v1245 = vunpack.c.l.b16 %v253
    %v1246 = vunpack.c.l.b16 %v254
    %v1247 = vunpack.c.l.b16 %v255
    %v1248 = vunpack.c.l.b16 %v256
    %v1249 = vunpack.c.l.b16 %v257
    %v1250 = vunpack.c.l.b16 %v258
    %v1251 = vunpack.c.l.b16 %v259
    %v1252 = vunpack.c.l.b16 %v260
    %v1253 = vunpack.c.l.b16 %v261
    %v1254 = vunpack.c.l.b16 %v262
    %v1255 = vunpack.c.l.b16 %v263
    %v1256 = vunpack.c.l.b16 %v264
    %v1257 = vunpack.c.l.b16 %v265
    %v1258 = vunpack.c.l.b16 %v266
    %v1259 = vunpack.c.l.b16 %v267
    %v1260 = vunpack.c.l.b16 %v268
    %v1261 = vunpack.c.l.b16 %v269
    %v1262 = vunpack.c.l.b16 %v270
    %v1263 = vunpack.c.l.b16 %v271
    %v1264 = vunpack.c.l.b16 %v272
    %v1265 = vunpack.c.l.b16 %v273
    %v1266 = vunpack.c.l.b16 %v274
    %v1267 = vunpack.c.l.b16 %v275
    %v1268 = vunpack.c.l.b16 %v276
    %v1269 = vunpack.c.l.b16 %v277
    %v1270 = vunpack.c.l.b16 %v278
    %v1271 = vunpack.c.l.b16 %v279
    %v1272 = vunpack.c.l.b16 %v280
    %v1273 = vunpack.c.l.b16 %v281
    %v1274 = vunpack.c.l.b16 %v282
    %v1275 = vunpack.c.l.b16 %v283
    %v1276 = vunpack.c.l.b16 %v284
    %v1277 = vunpack.c.l.b16 %v285
    %v1278 = vunpack.c.l.b16 %v286
    %v1279 = vunpack.c.l.b16 %v287
    %v1280 = vunpack.c.l.b16 %v288
    %v1281 = vunpack.c.l.b16 %v289
    %v1282 = vunpack.c.l.b16 %v290
    %v1283 = vunpack.c.l.b16 %v291
    %v1284 = vunpack.c.l.b16 %v292
    %v1285 = vunpack.c.l.b16 %v293
    %v1286 = vunpack.c.l.b16 %v294
    %v1287 = vunpack.c.l.b16 %v295
    %v1288 = vunpack.c.l.b16 %v296
    %v1289 = vunpack.c.l.b16 %v297
    %v1290 = vunpack.c.l.b16 %v298
    %v1291 = vunpack.c.l.b16 %v299
    %v1292 = vunpack.c.l.b16 %v300
    %v1293 = vunpack.c.l.b16 %v301
    %v1294 = vunpack.c.l.b16 %v302
    %v1295 = vunpack.c.l.b16 %v303
    %v1296 = vunpack.c.l.b16 %v304
    %v1297 = vunpack.c.l.b16 %v305
    %v1298 = vunpack.c.l.b16 %v306
    %v1299 = vunpack.c.l.b16 %v307
    %v1300 = vunpack.c.l.b16 %v308
    %v1301 = vunpack.c.l.b16 %v309
    %v1302 = vunpack.c.l.b16 %v310
    %v1303 = vunpack.c.l.b16 %v311
    %v1304 = vunpack.c.l.b16 %v312
    %v1305 = vunpack.c.l.b16 %v313
    %v1306 = vunpack.c.l.b16 %v314
    %v1307 = vunpack.c.l.b16 %v315
    %v1308 = vunpack.c.l.b16 %v316
    %v1309 = vunpack.c.l.b16 %v317
    %v1310 = vunpack.c.l.b16 %v318
    %v1311 = vunpack.c.l.b16 %v319
    %v1312 = vunpack.c.l.b16 %v320
    %v1313 = vunpack.c.l.b16 %v321
    %v1314 = vpack.c.b16 %v1235, %v1234
    %v1315 = vpack.c.b16 %v1237, %v1236
    %v1316 = vpack.c.b16 %v1239, %v1238
    %v1317 = vpack.c.b16 %v1241, %v1240
    %v1318 = vpack.c.b16 %v1243, %v1242
    %v1319 = vpack.c.b16 %v1245, %v1244
    %v1320 = vpack.c.b16 %v1247, %v1246
    %v1321 = vpack.c.b16 %v1249, %v1248
    %v1322 = vpack.c.b16 %v1251, %v1250
    %v1323 = vpack.c.b16 %v1253, %v1252
    %v1324 = vpack.c.b16 %v1255, %v1254
    %v1325 = vpack.c.b16 %v1257, %v1256
    %v1326 = vpack.c.b16 %v1259, %v1258
    %v1327 = vpack.c.b16 %v1261, %v1260
    %v1328 = vpack.c.b16 %v1263, %v1262
    %v1329 = vpack.c.b16 %v1265, %v1264
    %v1330 = vpack.c.b16 %v1267, %v1266
    %v1331 = vpack.c.b16 %v1269, %v1268
    %v1332 = vpack.c.b16 %v1271, %v1270
    %v1333 = vpack.c.b16 %v1273, %v1272
    %v1334 = vpack.c.b16 %v1275, %v1274
    %v1335 = vpack.c.b16 %v1277, %v1276
    %v1336 = vpack.c.b16 %v1279, %v1278
    %v1337 = vpack.c.b16 %v1281, %v1280
    %v1338 = vpack.c.b16 %v1283, %v1282
    %v1339 = vpack.c.b16 %v1285, %v1284
    %v1340 = vpack.c.b16 %v1287, %v1286
    %v1341 = vpack.c.b16 %v1289, %v1288
    %v1342 = vpack.c.b16 %v1291, %v1290
    %v1343 = vpack.c.b16 %v1293, %v1292
    %v1344 = vpack.c.b16 %v1295, %v1294
    %v1345 = vpack.c.b16 %v1297, %v1296
    %v1346 = vpack.c.b16 %v1299, %v1298
    %v1347 = vpack.c.b16 %v1301, %v1300
    %v1348 = vpack.c.b16 %v1303, %v1302
    %v1349 = vpack.c.b16 %v1305, %v1304
    %v1350 = vpack.c.b16 %v1307, %v1306
    %v1351 = vpack.c.b16 %v1309, %v1308
    %v1352 = vpack.c.b16 %v1311, %v1310
    %v1353 = vpack.c.b16 %v1313, %v1312
    %1394 = vmatpush.bf16.msra.mxu0 %v1321
    %1395 = vmatpush.bf16.msra.mxu0 %v1320
    %1396 = vmatpush.bf16.msra.mxu0 %v1319
    %1397 = vmatpush.bf16.msra.mxu0 %v1318
    %1398 = vmatpush.bf16.msra.mxu0 %v1317
    %1399 = vmatpush.bf16.msra.mxu0 %v1316
    %1400 = vmatpush.bf16.msra.mxu0 %v1315
    %1401 = vmatpush.bf16.msra.mxu0 %v1314
    %1402 = vmatmul.bf16.gmra.mxu0 %v834
    %v1403 = vpop.f32.mrf.mxu0
    %v1404 = vadd.f32 0.0, %v1403
    %v1405 = vpop.f32.mrf.mxu0
    %v1406 = vadd.f32 0.0, %v1405
    %1407 = vmatmul.bf16.gmra.mxu0 %v839
    %v1408 = vpop.f32.mrf.mxu0
    %v1409 = vadd.f32 0.0, %v1408
    %v1410 = vpop.f32.mrf.mxu0
    %v1411 = vadd.f32 0.0, %v1410
    %1412 = vmatmul.bf16.gmra.mxu0 %v844
    %v1413 = vpop.f32.mrf.mxu0
    %v1414 = vadd.f32 0.0, %v1413
    %v1415 = vpop.f32.mrf.mxu0
    %v1416 = vadd.f32 0.0, %v1415
    %1417 = vmatmul.bf16.gmra.mxu0 %v849
    %v1418 = vpop.f32.mrf.mxu0
    %v1419 = vadd.f32 0.0, %v1418
    %v1420 = vpop.f32.mrf.mxu0
    %v1421 = vadd.f32 0.0, %v1420
    %1422 = vmatmul.bf16.gmra.mxu0 %v854
    %v1423 = vpop.f32.mrf.mxu0
    %v1424 = vadd.f32 0.0, %v1423
    %v1425 = vpop.f32.mrf.mxu0
    %v1426 = vadd.f32 0.0, %v1425
    %1427 = vmatmul.bf16.gmra.mxu0 %v859
    %v1428 = vpop.f32.mrf.mxu0
    %v1429 = vadd.f32 0.0, %v1428
    %v1430 = vpop.f32.mrf.mxu0
    %v1431 = vadd.f32 0.0, %v1430
    %1432 = vmatmul.bf16.gmra.mxu0 %v864
    %v1433 = vpop.f32.mrf.mxu0
    %v1434 = vadd.f32 0.0, %v1433
    %v1435 = vpop.f32.mrf.mxu0
    %v1436 = vadd.f32 0.0, %v1435
    %1437 = vmatmul.bf16.gmra.mxu0 %v869
    %v1438 = vpop.f32.mrf.mxu0
    %v1439 = vadd.f32 0.0, %v1438
    %v1440 = vpop.f32.mrf.mxu0
    %v1441 = vadd.f32 0.0, %v1440
    %1442 = vmatmul.bf16.gmra.mxu0 %v874
    %v1443 = vpop.f32.mrf.mxu0
    %v1444 = vadd.f32 0.0, %v1443
    %v1445 = vpop.f32.mrf.mxu0
    %v1446 = vadd.f32 0.0, %v1445
    %1447 = vmatmul.bf16.gmra.mxu0 %v879
    %v1448 = vpop.f32.mrf.mxu0
    %v1449 = vadd.f32 0.0, %v1448
    %v1450 = vpop.f32.mrf.mxu0
    %v1451 = vadd.f32 0.0, %v1450
    %1452 = vmatmul.bf16.gmra.mxu0 %v884
    %v1453 = vpop.f32.mrf.mxu0
    %v1454 = vadd.f32 0.0, %v1453
    %v1455 = vpop.f32.mrf.mxu0
    %v1456 = vadd.f32 0.0, %v1455
    %1457 = vmatmul.bf16.gmra.mxu0 %v889
    %v1458 = vpop.f32.mrf.mxu0
    %v1459 = vadd.f32 0.0, %v1458
    %v1460 = vpop.f32.mrf.mxu0
    %v1461 = vadd.f32 0.0, %v1460
    %1462 = vmatmul.bf16.gmra.mxu0 %v894
    %v1463 = vpop.f32.mrf.mxu0
    %v1464 = vadd.f32 0.0, %v1463
    %v1465 = vpop.f32.mrf.mxu0
    %v1466 = vadd.f32 0.0, %v1465
    %1467 = vmatmul.bf16.gmra.mxu0 %v899
    %v1468 = vpop.f32.mrf.mxu0
    %v1469 = vadd.f32 0.0, %v1468
    %v1470 = vpop.f32.mrf.mxu0
    %v1471 = vadd.f32 0.0, %v1470
    %1472 = vmatmul.bf16.gmra.mxu0 %v904
    %v1473 = vpop.f32.mrf.mxu0
    %v1474 = vadd.f32 0.0, %v1473
    %v1475 = vpop.f32.mrf.mxu0
    %v1476 = vadd.f32 0.0, %v1475
    %1477 = vmatmul.bf16.gmra.mxu0 %v909
    %v1478 = vpop.f32.mrf.mxu0
    %v1479 = vadd.f32 0.0, %v1478
    %v1480 = vpop.f32.mrf.mxu0
    %v1481 = vadd.f32 0.0, %v1480
    %1482 = vmatmul.bf16.gmra.mxu0 %v914
    %v1483 = vpop.f32.mrf.mxu0
    %v1484 = vadd.f32 0.0, %v1483
    %v1485 = vpop.f32.mrf.mxu0
    %v1486 = vadd.f32 0.0, %v1485
    %1487 = vmatmul.bf16.gmra.mxu0 %v919
    %v1488 = vpop.f32.mrf.mxu0
    %v1489 = vadd.f32 0.0, %v1488
    %v1490 = vpop.f32.mrf.mxu0
    %v1491 = vadd.f32 0.0, %v1490
    %1492 = vmatmul.bf16.gmra.mxu0 %v924
    %v1493 = vpop.f32.mrf.mxu0
    %v1494 = vadd.f32 0.0, %v1493
    %v1495 = vpop.f32.mrf.mxu0
    %v1496 = vadd.f32 0.0, %v1495
    %1497 = vmatmul.bf16.gmra.mxu0 %v929
    %v1498 = vpop.f32.mrf.mxu0
    %v1499 = vadd.f32 0.0, %v1498
    %v1500 = vpop.f32.mrf.mxu0
    %v1501 = vadd.f32 0.0, %v1500
    %1502 = vmatmul.bf16.gmra.mxu0 %v934
    %v1503 = vpop.f32.mrf.mxu0
    %v1504 = vadd.f32 0.0, %v1503
    %v1505 = vpop.f32.mrf.mxu0
    %v1506 = vadd.f32 0.0, %v1505
    %1507 = vmatmul.bf16.gmra.mxu0 %v939
    %v1508 = vpop.f32.mrf.mxu0
    %v1509 = vadd.f32 0.0, %v1508
    %v1510 = vpop.f32.mrf.mxu0
    %v1511 = vadd.f32 0.0, %v1510
    %1512 = vmatmul.bf16.gmra.mxu0 %v944
    %v1513 = vpop.f32.mrf.mxu0
    %v1514 = vadd.f32 0.0, %v1513
    %v1515 = vpop.f32.mrf.mxu0
    %v1516 = vadd.f32 0.0, %v1515
    %1517 = vmatmul.bf16.gmra.mxu0 %v949
    %v1518 = vpop.f32.mrf.mxu0
    %v1519 = vadd.f32 0.0, %v1518
    %v1520 = vpop.f32.mrf.mxu0
    %v1521 = vadd.f32 0.0, %v1520
    %1522 = vmatmul.bf16.gmra.mxu0 %v954
    %v1523 = vpop.f32.mrf.mxu0
    %v1524 = vadd.f32 0.0, %v1523
    %v1525 = vpop.f32.mrf.mxu0
    %v1526 = vadd.f32 0.0, %v1525
    %1527 = vmatmul.bf16.gmra.mxu0 %v959
    %v1528 = vpop.f32.mrf.mxu0
    %v1529 = vadd.f32 0.0, %v1528
    %v1530 = vpop.f32.mrf.mxu0
    %v1531 = vadd.f32 0.0, %v1530
    %1532 = vmatmul.bf16.gmra.mxu0 %v964
    %v1533 = vpop.f32.mrf.mxu0
    %v1534 = vadd.f32 0.0, %v1533
    %v1535 = vpop.f32.mrf.mxu0
    %v1536 = vadd.f32 0.0, %v1535
    %1537 = vmatmul.bf16.gmra.mxu0 %v969
    %v1538 = vpop.f32.mrf.mxu0
    %v1539 = vadd.f32 0.0, %v1538
    %v1540 = vpop.f32.mrf.mxu0
    %v1541 = vadd.f32 0.0, %v1540
    %1542 = vmatmul.bf16.gmra.mxu0 %v974
    %v1543 = vpop.f32.mrf.mxu0
    %v1544 = vadd.f32 0.0, %v1543
    %v1545 = vpop.f32.mrf.mxu0
    %v1546 = vadd.f32 0.0, %v1545
    %1547 = vmatmul.bf16.gmra.mxu0 %v979
    %v1548 = vpop.f32.mrf.mxu0
    %v1549 = vadd.f32 0.0, %v1548
    %v1550 = vpop.f32.mrf.mxu0
    %v1551 = vadd.f32 0.0, %v1550
    %1552 = vmatmul.bf16.gmra.mxu0 %v984
    %v1553 = vpop.f32.mrf.mxu0
    %v1554 = vadd.f32 0.0, %v1553
    %v1555 = vpop.f32.mrf.mxu0
    %v1556 = vadd.f32 0.0, %v1555
    %1557 = vmatmul.bf16.gmra.mxu0 %v989
    %v1558 = vpop.f32.mrf.mxu0
    %v1559 = vadd.f32 0.0, %v1558
    %v1560 = vpop.f32.mrf.mxu0
    %v1561 = vadd.f32 0.0, %v1560
    %1562 = vdwg.mxu0
    %1563 = vmatpush.bf16.msra.mxu0 %v1329
    %1564 = vmatpush.bf16.msra.mxu0 %v1328
    %1565 = vmatpush.bf16.msra.mxu0 %v1327
    %1566 = vmatpush.bf16.msra.mxu0 %v1326
    %1567 = vmatpush.bf16.msra.mxu0 %v1325
    %1568 = vmatpush.bf16.msra.mxu0 %v1324
    %1569 = vmatpush.bf16.msra.mxu0 %v1323
    %1570 = vmatpush.bf16.msra.mxu0 %v1322
    %1571 = vmatmul.bf16.gmra.mxu0 %v835
    %v1572 = vpop.f32.mrf.mxu0
    %v1573 = vadd.f32 %v1404, %v1572
    %v1574 = vpop.f32.mrf.mxu0
    %v1575 = vadd.f32 %v1406, %v1574
    %1576 = vmatmul.bf16.gmra.mxu0 %v840
    %v1577 = vpop.f32.mrf.mxu0
    %v1578 = vadd.f32 %v1409, %v1577
    %v1579 = vpop.f32.mrf.mxu0
    %v1580 = vadd.f32 %v1411, %v1579
    %1581 = vmatmul.bf16.gmra.mxu0 %v845
    %v1582 = vpop.f32.mrf.mxu0
    %v1583 = vadd.f32 %v1414, %v1582
    %v1584 = vpop.f32.mrf.mxu0
    %v1585 = vadd.f32 %v1416, %v1584
    %1586 = vmatmul.bf16.gmra.mxu0 %v850
    %v1587 = vpop.f32.mrf.mxu0
    %v1588 = vadd.f32 %v1419, %v1587
    %v1589 = vpop.f32.mrf.mxu0
    %v1590 = vadd.f32 %v1421, %v1589
    %1591 = vmatmul.bf16.gmra.mxu0 %v855
    %v1592 = vpop.f32.mrf.mxu0
    %v1593 = vadd.f32 %v1424, %v1592
    %v1594 = vpop.f32.mrf.mxu0
    %v1595 = vadd.f32 %v1426, %v1594
    %1596 = vmatmul.bf16.gmra.mxu0 %v860
    %v1597 = vpop.f32.mrf.mxu0
    %v1598 = vadd.f32 %v1429, %v1597
    %v1599 = vpop.f32.mrf.mxu0
    %v1600 = vadd.f32 %v1431, %v1599
    %1601 = vmatmul.bf16.gmra.mxu0 %v865
    %v1602 = vpop.f32.mrf.mxu0
    %v1603 = vadd.f32 %v1434, %v1602
    %v1604 = vpop.f32.mrf.mxu0
    %v1605 = vadd.f32 %v1436, %v1604
    %1606 = vmatmul.bf16.gmra.mxu0 %v870
    %v1607 = vpop.f32.mrf.mxu0
    %v1608 = vadd.f32 %v1439, %v1607
    %v1609 = vpop.f32.mrf.mxu0
    %v1610 = vadd.f32 %v1441, %v1609
    %1611 = vmatmul.bf16.gmra.mxu0 %v875
    %v1612 = vpop.f32.mrf.mxu0
    %v1613 = vadd.f32 %v1444, %v1612
    %v1614 = vpop.f32.mrf.mxu0
    %v1615 = vadd.f32 %v1446, %v1614
    %1616 = vmatmul.bf16.gmra.mxu0 %v880
    %v1617 = vpop.f32.mrf.mxu0
    %v1618 = vadd.f32 %v1449, %v1617
    %v1619 = vpop.f32.mrf.mxu0
    %v1620 = vadd.f32 %v1451, %v1619
    %1621 = vmatmul.bf16.gmra.mxu0 %v885
    %v1622 = vpop.f32.mrf.mxu0
    %v1623 = vadd.f32 %v1454, %v1622
    %v1624 = vpop.f32.mrf.mxu0
    %v1625 = vadd.f32 %v1456, %v1624
    %1626 = vmatmul.bf16.gmra.mxu0 %v890
    %v1627 = vpop.f32.mrf.mxu0
    %v1628 = vadd.f32 %v1459, %v1627
    %v1629 = vpop.f32.mrf.mxu0
    %v1630 = vadd.f32 %v1461, %v1629
    %1631 = vmatmul.bf16.gmra.mxu0 %v895
    %v1632 = vpop.f32.mrf.mxu0
    %v1633 = vadd.f32 %v1464, %v1632
    %v1634 = vpop.f32.mrf.mxu0
    %v1635 = vadd.f32 %v1466, %v1634
    %1636 = vmatmul.bf16.gmra.mxu0 %v900
    %v1637 = vpop.f32.mrf.mxu0
    %v1638 = vadd.f32 %v1469, %v1637
    %v1639 = vpop.f32.mrf.mxu0
    %v1640 = vadd.f32 %v1471, %v1639
    %1641 = vmatmul.bf16.gmra.mxu0 %v905
    %v1642 = vpop.f32.mrf.mxu0
    %v1643 = vadd.f32 %v1474, %v1642
    %v1644 = vpop.f32.mrf.mxu0
    %v1645 = vadd.f32 %v1476, %v1644
    %1646 = vmatmul.bf16.gmra.mxu0 %v910
    %v1647 = vpop.f32.mrf.mxu0
    %v1648 = vadd.f32 %v1479, %v1647
    %v1649 = vpop.f32.mrf.mxu0
    %v1650 = vadd.f32 %v1481, %v1649
    %1651 = vmatmul.bf16.gmra.mxu0 %v915
    %v1652 = vpop.f32.mrf.mxu0
    %v1653 = vadd.f32 %v1484, %v1652
    %v1654 = vpop.f32.mrf.mxu0
    %v1655 = vadd.f32 %v1486, %v1654
    %1656 = vmatmul.bf16.gmra.mxu0 %v920
    %v1657 = vpop.f32.mrf.mxu0
    %v1658 = vadd.f32 %v1489, %v1657
    %v1659 = vpop.f32.mrf.mxu0
    %v1660 = vadd.f32 %v1491, %v1659
    %1661 = vmatmul.bf16.gmra.mxu0 %v925
    %v1662 = vpop.f32.mrf.mxu0
    %v1663 = vadd.f32 %v1494, %v1662
    %v1664 = vpop.f32.mrf.mxu0
    %v1665 = vadd.f32 %v1496, %v1664
    %1666 = vmatmul.bf16.gmra.mxu0 %v930
    %v1667 = vpop.f32.mrf.mxu0
    %v1668 = vadd.f32 %v1499, %v1667
    %v1669 = vpop.f32.mrf.mxu0
    %v1670 = vadd.f32 %v1501, %v1669
    %1671 = vmatmul.bf16.gmra.mxu0 %v935
    %v1672 = vpop.f32.mrf.mxu0
    %v1673 = vadd.f32 %v1504, %v1672
    %v1674 = vpop.f32.mrf.mxu0
    %v1675 = vadd.f32 %v1506, %v1674
    %1676 = vmatmul.bf16.gmra.mxu0 %v940
    %v1677 = vpop.f32.mrf.mxu0
    %v1678 = vadd.f32 %v1509, %v1677
    %v1679 = vpop.f32.mrf.mxu0
    %v1680 = vadd.f32 %v1511, %v1679
    %1681 = vmatmul.bf16.gmra.mxu0 %v945
    %v1682 = vpop.f32.mrf.mxu0
    %v1683 = vadd.f32 %v1514, %v1682
    %v1684 = vpop.f32.mrf.mxu0
    %v1685 = vadd.f32 %v1516, %v1684
    %1686 = vmatmul.bf16.gmra.mxu0 %v950
    %v1687 = vpop.f32.mrf.mxu0
    %v1688 = vadd.f32 %v1519, %v1687
    %v1689 = vpop.f32.mrf.mxu0
    %v1690 = vadd.f32 %v1521, %v1689
    %1691 = vmatmul.bf16.gmra.mxu0 %v955
    %v1692 = vpop.f32.mrf.mxu0
    %v1693 = vadd.f32 %v1524, %v1692
    %v1694 = vpop.f32.mrf.mxu0
    %v1695 = vadd.f32 %v1526, %v1694
    %1696 = vmatmul.bf16.gmra.mxu0 %v960
    %v1697 = vpop.f32.mrf.mxu0
    %v1698 = vadd.f32 %v1529, %v1697
    %v1699 = vpop.f32.mrf.mxu0
    %v1700 = vadd.f32 %v1531, %v1699
    %1701 = vmatmul.bf16.gmra.mxu0 %v965
    %v1702 = vpop.f32.mrf.mxu0
    %v1703 = vadd.f32 %v1534, %v1702
    %v1704 = vpop.f32.mrf.mxu0
    %v1705 = vadd.f32 %v1536, %v1704
    %1706 = vmatmul.bf16.gmra.mxu0 %v970
    %v1707 = vpop.f32.mrf.mxu0
    %v1708 = vadd.f32 %v1539, %v1707
    %v1709 = vpop.f32.mrf.mxu0
    %v1710 = vadd.f32 %v1541, %v1709
    %1711 = vmatmul.bf16.gmra.mxu0 %v975
    %v1712 = vpop.f32.mrf.mxu0
    %v1713 = vadd.f32 %v1544, %v1712
    %v1714 = vpop.f32.mrf.mxu0
    %v1715 = vadd.f32 %v1546, %v1714
    %1716 = vmatmul.bf16.gmra.mxu0 %v980
    %v1717 = vpop.f32.mrf.mxu0
    %v1718 = vadd.f32 %v1549, %v1717
    %v1719 = vpop.f32.mrf.mxu0
    %v1720 = vadd.f32 %v1551, %v1719
    %1721 = vmatmul.bf16.gmra.mxu0 %v985
    %v1722 = vpop.f32.mrf.mxu0
    %v1723 = vadd.f32 %v1554, %v1722
    %v1724 = vpop.f32.mrf.mxu0
    %v1725 = vadd.f32 %v1556, %v1724
    %1726 = vmatmul.bf16.gmra.mxu0 %v990
    %v1727 = vpop.f32.mrf.mxu0
    %v1728 = vadd.f32 %v1559, %v1727
    %v1729 = vpop.f32.mrf.mxu0
    %v1730 = vadd.f32 %v1561, %v1729
    %1731 = vdwg.mxu0
    %1732 = vmatpush.bf16.msra.mxu0 %v1337
    %1733 = vmatpush.bf16.msra.mxu0 %v1336
    %1734 = vmatpush.bf16.msra.mxu0 %v1335
    %1735 = vmatpush.bf16.msra.mxu0 %v1334
    %1736 = vmatpush.bf16.msra.mxu0 %v1333
    %1737 = vmatpush.bf16.msra.mxu0 %v1332
    %1738 = vmatpush.bf16.msra.mxu0 %v1331
    %1739 = vmatpush.bf16.msra.mxu0 %v1330
    %1740 = vmatmul.bf16.gmra.mxu0 %v836
    %v1741 = vpop.f32.mrf.mxu0
    %v1742 = vadd.f32 %v1573, %v1741
    %v1743 = vpop.f32.mrf.mxu0
    %v1744 = vadd.f32 %v1575, %v1743
    %1745 = vmatmul.bf16.gmra.mxu0 %v841
    %v1746 = vpop.f32.mrf.mxu0
    %v1747 = vadd.f32 %v1578, %v1746
    %v1748 = vpop.f32.mrf.mxu0
    %v1749 = vadd.f32 %v1580, %v1748
    %1750 = vmatmul.bf16.gmra.mxu0 %v846
    %v1751 = vpop.f32.mrf.mxu0
    %v1752 = vadd.f32 %v1583, %v1751
    %v1753 = vpop.f32.mrf.mxu0
    %v1754 = vadd.f32 %v1585, %v1753
    %1755 = vmatmul.bf16.gmra.mxu0 %v851
    %v1756 = vpop.f32.mrf.mxu0
    %v1757 = vadd.f32 %v1588, %v1756
    %v1758 = vpop.f32.mrf.mxu0
    %v1759 = vadd.f32 %v1590, %v1758
    %1760 = vmatmul.bf16.gmra.mxu0 %v856
    %v1761 = vpop.f32.mrf.mxu0
    %v1762 = vadd.f32 %v1593, %v1761
    %v1763 = vpop.f32.mrf.mxu0
    %v1764 = vadd.f32 %v1595, %v1763
    %1765 = vmatmul.bf16.gmra.mxu0 %v861
    %v1766 = vpop.f32.mrf.mxu0
    %v1767 = vadd.f32 %v1598, %v1766
    %v1768 = vpop.f32.mrf.mxu0
    %v1769 = vadd.f32 %v1600, %v1768
    %1770 = vmatmul.bf16.gmra.mxu0 %v866
    %v1771 = vpop.f32.mrf.mxu0
    %v1772 = vadd.f32 %v1603, %v1771
    %v1773 = vpop.f32.mrf.mxu0
    %v1774 = vadd.f32 %v1605, %v1773
    %1775 = vmatmul.bf16.gmra.mxu0 %v871
    %v1776 = vpop.f32.mrf.mxu0
    %v1777 = vadd.f32 %v1608, %v1776
    %v1778 = vpop.f32.mrf.mxu0
    %v1779 = vadd.f32 %v1610, %v1778
    %1780 = vmatmul.bf16.gmra.mxu0 %v876
    %v1781 = vpop.f32.mrf.mxu0
    %v1782 = vadd.f32 %v1613, %v1781
    %v1783 = vpop.f32.mrf.mxu0
    %v1784 = vadd.f32 %v1615, %v1783
    %1785 = vmatmul.bf16.gmra.mxu0 %v881
    %v1786 = vpop.f32.mrf.mxu0
    %v1787 = vadd.f32 %v1618, %v1786
    %v1788 = vpop.f32.mrf.mxu0
    %v1789 = vadd.f32 %v1620, %v1788
    %1790 = vmatmul.bf16.gmra.mxu0 %v886
    %v1791 = vpop.f32.mrf.mxu0
    %v1792 = vadd.f32 %v1623, %v1791
    %v1793 = vpop.f32.mrf.mxu0
    %v1794 = vadd.f32 %v1625, %v1793
    %1795 = vmatmul.bf16.gmra.mxu0 %v891
    %v1796 = vpop.f32.mrf.mxu0
    %v1797 = vadd.f32 %v1628, %v1796
    %v1798 = vpop.f32.mrf.mxu0
    %v1799 = vadd.f32 %v1630, %v1798
    %1800 = vmatmul.bf16.gmra.mxu0 %v896
    %v1801 = vpop.f32.mrf.mxu0
    %v1802 = vadd.f32 %v1633, %v1801
    %v1803 = vpop.f32.mrf.mxu0
    %v1804 = vadd.f32 %v1635, %v1803
    %1805 = vmatmul.bf16.gmra.mxu0 %v901
    %v1806 = vpop.f32.mrf.mxu0
    %v1807 = vadd.f32 %v1638, %v1806
    %v1808 = vpop.f32.mrf.mxu0
    %v1809 = vadd.f32 %v1640, %v1808
    %1810 = vmatmul.bf16.gmra.mxu0 %v906
    %v1811 = vpop.f32.mrf.mxu0
    %v1812 = vadd.f32 %v1643, %v1811
    %v1813 = vpop.f32.mrf.mxu0
    %v1814 = vadd.f32 %v1645, %v1813
    %1815 = vmatmul.bf16.gmra.mxu0 %v911
    %v1816 = vpop.f32.mrf.mxu0
    %v1817 = vadd.f32 %v1648, %v1816
    %v1818 = vpop.f32.mrf.mxu0
    %v1819 = vadd.f32 %v1650, %v1818
    %1820 = vmatmul.bf16.gmra.mxu0 %v916
    %v1821 = vpop.f32.mrf.mxu0
    %v1822 = vadd.f32 %v1653, %v1821
    %v1823 = vpop.f32.mrf.mxu0
    %v1824 = vadd.f32 %v1655, %v1823
    %1825 = vmatmul.bf16.gmra.mxu0 %v921
    %v1826 = vpop.f32.mrf.mxu0
    %v1827 = vadd.f32 %v1658, %v1826
    %v1828 = vpop.f32.mrf.mxu0
    %v1829 = vadd.f32 %v1660, %v1828
    %1830 = vmatmul.bf16.gmra.mxu0 %v926
    %v1831 = vpop.f32.mrf.mxu0
    %v1832 = vadd.f32 %v1663, %v1831
    %v1833 = vpop.f32.mrf.mxu0
    %v1834 = vadd.f32 %v1665, %v1833
    %1835 = vmatmul.bf16.gmra.mxu0 %v931
    %v1836 = vpop.f32.mrf.mxu0
    %v1837 = vadd.f32 %v1668, %v1836
    %v1838 = vpop.f32.mrf.mxu0
    %v1839 = vadd.f32 %v1670, %v1838
    %1840 = vmatmul.bf16.gmra.mxu0 %v936
    %v1841 = vpop.f32.mrf.mxu0
    %v1842 = vadd.f32 %v1673, %v1841
    %v1843 = vpop.f32.mrf.mxu0
    %v1844 = vadd.f32 %v1675, %v1843
    %1845 = vmatmul.bf16.gmra.mxu0 %v941
    %v1846 = vpop.f32.mrf.mxu0
    %v1847 = vadd.f32 %v1678, %v1846
    %v1848 = vpop.f32.mrf.mxu0
    %v1849 = vadd.f32 %v1680, %v1848
    %1850 = vmatmul.bf16.gmra.mxu0 %v946
    %v1851 = vpop.f32.mrf.mxu0
    %v1852 = vadd.f32 %v1683, %v1851
    %v1853 = vpop.f32.mrf.mxu0
    %v1854 = vadd.f32 %v1685, %v1853
    %1855 = vmatmul.bf16.gmra.mxu0 %v951
    %v1856 = vpop.f32.mrf.mxu0
    %v1857 = vadd.f32 %v1688, %v1856
    %v1858 = vpop.f32.mrf.mxu0
    %v1859 = vadd.f32 %v1690, %v1858
    %1860 = vmatmul.bf16.gmra.mxu0 %v956
    %v1861 = vpop.f32.mrf.mxu0
    %v1862 = vadd.f32 %v1693, %v1861
    %v1863 = vpop.f32.mrf.mxu0
    %v1864 = vadd.f32 %v1695, %v1863
    %1865 = vmatmul.bf16.gmra.mxu0 %v961
    %v1866 = vpop.f32.mrf.mxu0
    %v1867 = vadd.f32 %v1698, %v1866
    %v1868 = vpop.f32.mrf.mxu0
    %v1869 = vadd.f32 %v1700, %v1868
    %1870 = vmatmul.bf16.gmra.mxu0 %v966
    %v1871 = vpop.f32.mrf.mxu0
    %v1872 = vadd.f32 %v1703, %v1871
    %v1873 = vpop.f32.mrf.mxu0
    %v1874 = vadd.f32 %v1705, %v1873
    %1875 = vmatmul.bf16.gmra.mxu0 %v971
    %v1876 = vpop.f32.mrf.mxu0
    %v1877 = vadd.f32 %v1708, %v1876
    %v1878 = vpop.f32.mrf.mxu0
    %v1879 = vadd.f32 %v1710, %v1878
    %1880 = vmatmul.bf16.gmra.mxu0 %v976
    %v1881 = vpop.f32.mrf.mxu0
    %v1882 = vadd.f32 %v1713, %v1881
    %v1883 = vpop.f32.mrf.mxu0
    %v1884 = vadd.f32 %v1715, %v1883
    %1885 = vmatmul.bf16.gmra.mxu0 %v981
    %v1886 = vpop.f32.mrf.mxu0
    %v1887 = vadd.f32 %v1718, %v1886
    %v1888 = vpop.f32.mrf.mxu0
    %v1889 = vadd.f32 %v1720, %v1888
    %1890 = vmatmul.bf16.gmra.mxu0 %v986
    %v1891 = vpop.f32.mrf.mxu0
    %v1892 = vadd.f32 %v1723, %v1891
    %v1893 = vpop.f32.mrf.mxu0
    %v1894 = vadd.f32 %v1725, %v1893
    %1895 = vmatmul.bf16.gmra.mxu0 %v991
    %v1896 = vpop.f32.mrf.mxu0
    %v1897 = vadd.f32 %v1728, %v1896
    %v1898 = vpop.f32.mrf.mxu0
    %v1899 = vadd.f32 %v1730, %v1898
    %1900 = vdwg.mxu0
    %1901 = vmatpush.bf16.msra.mxu0 %v1345
    %1902 = vmatpush.bf16.msra.mxu0 %v1344
    %1903 = vmatpush.bf16.msra.mxu0 %v1343
    %1904 = vmatpush.bf16.msra.mxu0 %v1342
    %1905 = vmatpush.bf16.msra.mxu0 %v1341
    %1906 = vmatpush.bf16.msra.mxu0 %v1340
    %1907 = vmatpush.bf16.msra.mxu0 %v1339
    %1908 = vmatpush.bf16.msra.mxu0 %v1338
    %1909 = vmatmul.bf16.gmra.mxu0 %v837
    %v1910 = vpop.f32.mrf.mxu0
    %v1911 = vadd.f32 %v1742, %v1910
    %v1912 = vpop.f32.mrf.mxu0
    %v1913 = vadd.f32 %v1744, %v1912
    %1914 = vmatmul.bf16.gmra.mxu0 %v842
    %v1915 = vpop.f32.mrf.mxu0
    %v1916 = vadd.f32 %v1747, %v1915
    %v1917 = vpop.f32.mrf.mxu0
    %v1918 = vadd.f32 %v1749, %v1917
    %1919 = vmatmul.bf16.gmra.mxu0 %v847
    %v1920 = vpop.f32.mrf.mxu0
    %v1921 = vadd.f32 %v1752, %v1920
    %v1922 = vpop.f32.mrf.mxu0
    %v1923 = vadd.f32 %v1754, %v1922
    %1924 = vmatmul.bf16.gmra.mxu0 %v852
    %v1925 = vpop.f32.mrf.mxu0
    %v1926 = vadd.f32 %v1757, %v1925
    %v1927 = vpop.f32.mrf.mxu0
    %v1928 = vadd.f32 %v1759, %v1927
    %1929 = vmatmul.bf16.gmra.mxu0 %v857
    %v1930 = vpop.f32.mrf.mxu0
    %v1931 = vadd.f32 %v1762, %v1930
    %v1932 = vpop.f32.mrf.mxu0
    %v1933 = vadd.f32 %v1764, %v1932
    %1934 = vmatmul.bf16.gmra.mxu0 %v862
    %v1935 = vpop.f32.mrf.mxu0
    %v1936 = vadd.f32 %v1767, %v1935
    %v1937 = vpop.f32.mrf.mxu0
    %v1938 = vadd.f32 %v1769, %v1937
    %1939 = vmatmul.bf16.gmra.mxu0 %v867
    %v1940 = vpop.f32.mrf.mxu0
    %v1941 = vadd.f32 %v1772, %v1940
    %v1942 = vpop.f32.mrf.mxu0
    %v1943 = vadd.f32 %v1774, %v1942
    %1944 = vmatmul.bf16.gmra.mxu0 %v872
    %v1945 = vpop.f32.mrf.mxu0
    %v1946 = vadd.f32 %v1777, %v1945
    %v1947 = vpop.f32.mrf.mxu0
    %v1948 = vadd.f32 %v1779, %v1947
    %1949 = vmatmul.bf16.gmra.mxu0 %v877
    %v1950 = vpop.f32.mrf.mxu0
    %v1951 = vadd.f32 %v1782, %v1950
    %v1952 = vpop.f32.mrf.mxu0
    %v1953 = vadd.f32 %v1784, %v1952
    %1954 = vmatmul.bf16.gmra.mxu0 %v882
    %v1955 = vpop.f32.mrf.mxu0
    %v1956 = vadd.f32 %v1787, %v1955
    %v1957 = vpop.f32.mrf.mxu0
    %v1958 = vadd.f32 %v1789, %v1957
    %1959 = vmatmul.bf16.gmra.mxu0 %v887
    %v1960 = vpop.f32.mrf.mxu0
    %v1961 = vadd.f32 %v1792, %v1960
    %v1962 = vpop.f32.mrf.mxu0
    %v1963 = vadd.f32 %v1794, %v1962
    %1964 = vmatmul.bf16.gmra.mxu0 %v892
    %v1965 = vpop.f32.mrf.mxu0
    %v1966 = vadd.f32 %v1797, %v1965
    %v1967 = vpop.f32.mrf.mxu0
    %v1968 = vadd.f32 %v1799, %v1967
    %1969 = vmatmul.bf16.gmra.mxu0 %v897
    %v1970 = vpop.f32.mrf.mxu0
    %v1971 = vadd.f32 %v1802, %v1970
    %v1972 = vpop.f32.mrf.mxu0
    %v1973 = vadd.f32 %v1804, %v1972
    %1974 = vmatmul.bf16.gmra.mxu0 %v902
    %v1975 = vpop.f32.mrf.mxu0
    %v1976 = vadd.f32 %v1807, %v1975
    %v1977 = vpop.f32.mrf.mxu0
    %v1978 = vadd.f32 %v1809, %v1977
    %1979 = vmatmul.bf16.gmra.mxu0 %v907
    %v1980 = vpop.f32.mrf.mxu0
    %v1981 = vadd.f32 %v1812, %v1980
    %v1982 = vpop.f32.mrf.mxu0
    %v1983 = vadd.f32 %v1814, %v1982
    %1984 = vmatmul.bf16.gmra.mxu0 %v912
    %v1985 = vpop.f32.mrf.mxu0
    %v1986 = vadd.f32 %v1817, %v1985
    %v1987 = vpop.f32.mrf.mxu0
    %v1988 = vadd.f32 %v1819, %v1987
    %1989 = vmatmul.bf16.gmra.mxu0 %v917
    %v1990 = vpop.f32.mrf.mxu0
    %v1991 = vadd.f32 %v1822, %v1990
    %v1992 = vpop.f32.mrf.mxu0
    %v1993 = vadd.f32 %v1824, %v1992
    %1994 = vmatmul.bf16.gmra.mxu0 %v922
    %v1995 = vpop.f32.mrf.mxu0
    %v1996 = vadd.f32 %v1827, %v1995
    %v1997 = vpop.f32.mrf.mxu0
    %v1998 = vadd.f32 %v1829, %v1997
    %1999 = vmatmul.bf16.gmra.mxu0 %v927
    %v2000 = vpop.f32.mrf.mxu0
    %v2001 = vadd.f32 %v1832, %v2000
    %v2002 = vpop.f32.mrf.mxu0
    %v2003 = vadd.f32 %v1834, %v2002
    %2004 = vmatmul.bf16.gmra.mxu0 %v932
    %v2005 = vpop.f32.mrf.mxu0
    %v2006 = vadd.f32 %v1837, %v2005
    %v2007 = vpop.f32.mrf.mxu0
    %v2008 = vadd.f32 %v1839, %v2007
    %2009 = vmatmul.bf16.gmra.mxu0 %v937
    %v2010 = vpop.f32.mrf.mxu0
    %v2011 = vadd.f32 %v1842, %v2010
    %v2012 = vpop.f32.mrf.mxu0
    %v2013 = vadd.f32 %v1844, %v2012
    %2014 = vmatmul.bf16.gmra.mxu0 %v942
    %v2015 = vpop.f32.mrf.mxu0
    %v2016 = vadd.f32 %v1847, %v2015
    %v2017 = vpop.f32.mrf.mxu0
    %v2018 = vadd.f32 %v1849, %v2017
    %2019 = vmatmul.bf16.gmra.mxu0 %v947
    %v2020 = vpop.f32.mrf.mxu0
    %v2021 = vadd.f32 %v1852, %v2020
    %v2022 = vpop.f32.mrf.mxu0
    %v2023 = vadd.f32 %v1854, %v2022
    %2024 = vmatmul.bf16.gmra.mxu0 %v952
    %v2025 = vpop.f32.mrf.mxu0
    %v2026 = vadd.f32 %v1857, %v2025
    %v2027 = vpop.f32.mrf.mxu0
    %v2028 = vadd.f32 %v1859, %v2027
    %2029 = vmatmul.bf16.gmra.mxu0 %v957
    %v2030 = vpop.f32.mrf.mxu0
    %v2031 = vadd.f32 %v1862, %v2030
    %v2032 = vpop.f32.mrf.mxu0
    %v2033 = vadd.f32 %v1864, %v2032
    %2034 = vmatmul.bf16.gmra.mxu0 %v962
    %v2035 = vpop.f32.mrf.mxu0
    %v2036 = vadd.f32 %v1867, %v2035
    %v2037 = vpop.f32.mrf.mxu0
    %v2038 = vadd.f32 %v1869, %v2037
    %2039 = vmatmul.bf16.gmra.mxu0 %v967
    %v2040 = vpop.f32.mrf.mxu0
    %v2041 = vadd.f32 %v1872, %v2040
    %v2042 = vpop.f32.mrf.mxu0
    %v2043 = vadd.f32 %v1874, %v2042
    %2044 = vmatmul.bf16.gmra.mxu0 %v972
    %v2045 = vpop.f32.mrf.mxu0
    %v2046 = vadd.f32 %v1877, %v2045
    %v2047 = vpop.f32.mrf.mxu0
    %v2048 = vadd.f32 %v1879, %v2047
    %2049 = vmatmul.bf16.gmra.mxu0 %v977
    %v2050 = vpop.f32.mrf.mxu0
    %v2051 = vadd.f32 %v1882, %v2050
    %v2052 = vpop.f32.mrf.mxu0
    %v2053 = vadd.f32 %v1884, %v2052
    %2054 = vmatmul.bf16.gmra.mxu0 %v982
    %v2055 = vpop.f32.mrf.mxu0
    %v2056 = vadd.f32 %v1887, %v2055
    %v2057 = vpop.f32.mrf.mxu0
    %v2058 = vadd.f32 %v1889, %v2057
    %2059 = vmatmul.bf16.gmra.mxu0 %v987
    %v2060 = vpop.f32.mrf.mxu0
    %v2061 = vadd.f32 %v1892, %v2060
    %v2062 = vpop.f32.mrf.mxu0
    %v2063 = vadd.f32 %v1894, %v2062
    %2064 = vmatmul.bf16.gmra.mxu0 %v992
    %v2065 = vpop.f32.mrf.mxu0
    %v2066 = vadd.f32 %v1897, %v2065
    %v2067 = vpop.f32.mrf.mxu0
    %v2068 = vadd.f32 %v1899, %v2067
    %2069 = vdwg.mxu0
    %2070 = vmatpush.bf16.msra.mxu0 %v1353
    %2071 = vmatpush.bf16.msra.mxu0 %v1352
    %2072 = vmatpush.bf16.msra.mxu0 %v1351
    %2073 = vmatpush.bf16.msra.mxu0 %v1350
    %2074 = vmatpush.bf16.msra.mxu0 %v1349
    %2075 = vmatpush.bf16.msra.mxu0 %v1348
    %2076 = vmatpush.bf16.msra.mxu0 %v1347
    %2077 = vmatpush.bf16.msra.mxu0 %v1346
    %2078 = vmatmul.bf16.gmra.mxu0 %v838
    %v2079 = vpop.f32.mrf.mxu0
    %v2080 = vadd.f32 %v1911, %v2079
    %v2081 = vpop.f32.mrf.mxu0
    %v2082 = vadd.f32 %v1913, %v2081
    %2083 = vmatmul.bf16.gmra.mxu0 %v843
    %v2084 = vpop.f32.mrf.mxu0
    %v2085 = vadd.f32 %v1916, %v2084
    %v2086 = vpop.f32.mrf.mxu0
    %v2087 = vadd.f32 %v1918, %v2086
    %2088 = vmatmul.bf16.gmra.mxu0 %v848
    %v2089 = vpop.f32.mrf.mxu0
    %v2090 = vadd.f32 %v1921, %v2089
    %v2091 = vpop.f32.mrf.mxu0
    %v2092 = vadd.f32 %v1923, %v2091
    %2093 = vmatmul.bf16.gmra.mxu0 %v853
    %v2094 = vpop.f32.mrf.mxu0
    %v2095 = vadd.f32 %v1926, %v2094
    %v2096 = vpop.f32.mrf.mxu0
    %v2097 = vadd.f32 %v1928, %v2096
    %2098 = vmatmul.bf16.gmra.mxu0 %v858
    %v2099 = vpop.f32.mrf.mxu0
    %v2100 = vadd.f32 %v1931, %v2099
    %v2101 = vpop.f32.mrf.mxu0
    %v2102 = vadd.f32 %v1933, %v2101
    %2103 = vmatmul.bf16.gmra.mxu0 %v863
    %v2104 = vpop.f32.mrf.mxu0
    %v2105 = vadd.f32 %v1936, %v2104
    %v2106 = vpop.f32.mrf.mxu0
    %v2107 = vadd.f32 %v1938, %v2106
    %2108 = vmatmul.bf16.gmra.mxu0 %v868
    %v2109 = vpop.f32.mrf.mxu0
    %v2110 = vadd.f32 %v1941, %v2109
    %v2111 = vpop.f32.mrf.mxu0
    %v2112 = vadd.f32 %v1943, %v2111
    %2113 = vmatmul.bf16.gmra.mxu0 %v873
    %v2114 = vpop.f32.mrf.mxu0
    %v2115 = vadd.f32 %v1946, %v2114
    %v2116 = vpop.f32.mrf.mxu0
    %v2117 = vadd.f32 %v1948, %v2116
    %2118 = vmatmul.bf16.gmra.mxu0 %v878
    %v2119 = vpop.f32.mrf.mxu0
    %v2120 = vadd.f32 %v1951, %v2119
    %v2121 = vpop.f32.mrf.mxu0
    %v2122 = vadd.f32 %v1953, %v2121
    %2123 = vmatmul.bf16.gmra.mxu0 %v883
    %v2124 = vpop.f32.mrf.mxu0
    %v2125 = vadd.f32 %v1956, %v2124
    %v2126 = vpop.f32.mrf.mxu0
    %v2127 = vadd.f32 %v1958, %v2126
    %2128 = vmatmul.bf16.gmra.mxu0 %v888
    %v2129 = vpop.f32.mrf.mxu0
    %v2130 = vadd.f32 %v1961, %v2129
    %v2131 = vpop.f32.mrf.mxu0
    %v2132 = vadd.f32 %v1963, %v2131
    %2133 = vmatmul.bf16.gmra.mxu0 %v893
    %v2134 = vpop.f32.mrf.mxu0
    %v2135 = vadd.f32 %v1966, %v2134
    %v2136 = vpop.f32.mrf.mxu0
    %v2137 = vadd.f32 %v1968, %v2136
    %2138 = vmatmul.bf16.gmra.mxu0 %v898
    %v2139 = vpop.f32.mrf.mxu0
    %v2140 = vadd.f32 %v1971, %v2139
    %v2141 = vpop.f32.mrf.mxu0
    %v2142 = vadd.f32 %v1973, %v2141
    %2143 = vmatmul.bf16.gmra.mxu0 %v903
    %v2144 = vpop.f32.mrf.mxu0
    %v2145 = vadd.f32 %v1976, %v2144
    %v2146 = vpop.f32.mrf.mxu0
    %v2147 = vadd.f32 %v1978, %v2146
    %2148 = vmatmul.bf16.gmra.mxu0 %v908
    %v2149 = vpop.f32.mrf.mxu0
    %v2150 = vadd.f32 %v1981, %v2149
    %v2151 = vpop.f32.mrf.mxu0
    %v2152 = vadd.f32 %v1983, %v2151
    %2153 = vmatmul.bf16.gmra.mxu0 %v913
    %v2154 = vpop.f32.mrf.mxu0
    %v2155 = vadd.f32 %v1986, %v2154
    %v2156 = vpop.f32.mrf.mxu0
    %v2157 = vadd.f32 %v1988, %v2156
    %2158 = vmatmul.bf16.gmra.mxu0 %v918
    %v2159 = vpop.f32.mrf.mxu0
    %v2160 = vadd.f32 %v1991, %v2159
    %v2161 = vpop.f32.mrf.mxu0
    %v2162 = vadd.f32 %v1993, %v2161
    %2163 = vmatmul.bf16.gmra.mxu0 %v923
    %v2164 = vpop.f32.mrf.mxu0
    %v2165 = vadd.f32 %v1996, %v2164
    %v2166 = vpop.f32.mrf.mxu0
    %v2167 = vadd.f32 %v1998, %v2166
    %2168 = vmatmul.bf16.gmra.mxu0 %v928
    %v2169 = vpop.f32.mrf.mxu0
    %v2170 = vadd.f32 %v2001, %v2169
    %v2171 = vpop.f32.mrf.mxu0
    %v2172 = vadd.f32 %v2003, %v2171
    %2173 = vmatmul.bf16.gmra.mxu0 %v933
    %v2174 = vpop.f32.mrf.mxu0
    %v2175 = vadd.f32 %v2006, %v2174
    %v2176 = vpop.f32.mrf.mxu0
    %v2177 = vadd.f32 %v2008, %v2176
    %2178 = vmatmul.bf16.gmra.mxu0 %v938
    %v2179 = vpop.f32.mrf.mxu0
    %v2180 = vadd.f32 %v2011, %v2179
    %v2181 = vpop.f32.mrf.mxu0
    %v2182 = vadd.f32 %v2013, %v2181
    %2183 = vmatmul.bf16.gmra.mxu0 %v943
    %v2184 = vpop.f32.mrf.mxu0
    %v2185 = vadd.f32 %v2016, %v2184
    %v2186 = vpop.f32.mrf.mxu0
    %v2187 = vadd.f32 %v2018, %v2186
    %2188 = vmatmul.bf16.gmra.mxu0 %v948
    %v2189 = vpop.f32.mrf.mxu0
    %v2190 = vadd.f32 %v2021, %v2189
    %v2191 = vpop.f32.mrf.mxu0
    %v2192 = vadd.f32 %v2023, %v2191
    %2193 = vmatmul.bf16.gmra.mxu0 %v953
    %v2194 = vpop.f32.mrf.mxu0
    %v2195 = vadd.f32 %v2026, %v2194
    %v2196 = vpop.f32.mrf.mxu0
    %v2197 = vadd.f32 %v2028, %v2196
    %2198 = vmatmul.bf16.gmra.mxu0 %v958
    %v2199 = vpop.f32.mrf.mxu0
    %v2200 = vadd.f32 %v2031, %v2199
    %v2201 = vpop.f32.mrf.mxu0
    %v2202 = vadd.f32 %v2033, %v2201
    %2203 = vmatmul.bf16.gmra.mxu0 %v963
    %v2204 = vpop.f32.mrf.mxu0
    %v2205 = vadd.f32 %v2036, %v2204
    %v2206 = vpop.f32.mrf.mxu0
    %v2207 = vadd.f32 %v2038, %v2206
    %2208 = vmatmul.bf16.gmra.mxu0 %v968
    %v2209 = vpop.f32.mrf.mxu0
    %v2210 = vadd.f32 %v2041, %v2209
    %v2211 = vpop.f32.mrf.mxu0
    %v2212 = vadd.f32 %v2043, %v2211
    %2213 = vmatmul.bf16.gmra.mxu0 %v973
    %v2214 = vpop.f32.mrf.mxu0
    %v2215 = vadd.f32 %v2046, %v2214
    %v2216 = vpop.f32.mrf.mxu0
    %v2217 = vadd.f32 %v2048, %v2216
    %2218 = vmatmul.bf16.gmra.mxu0 %v978
    %v2219 = vpop.f32.mrf.mxu0
    %v2220 = vadd.f32 %v2051, %v2219
    %v2221 = vpop.f32.mrf.mxu0
    %v2222 = vadd.f32 %v2053, %v2221
    %2223 = vmatmul.bf16.gmra.mxu0 %v983
    %v2224 = vpop.f32.mrf.mxu0
    %v2225 = vadd.f32 %v2056, %v2224
    %v2226 = vpop.f32.mrf.mxu0
    %v2227 = vadd.f32 %v2058, %v2226
    %2228 = vmatmul.bf16.gmra.mxu0 %v988
    %v2229 = vpop.f32.mrf.mxu0
    %v2230 = vadd.f32 %v2061, %v2229
    %v2231 = vpop.f32.mrf.mxu0
    %v2232 = vadd.f32 %v2063, %v2231
    %2233 = vmatmul.bf16.gmra.mxu0 %v993
    %v2234 = vpop.f32.mrf.mxu0
    %v2235 = vadd.f32 %v2066, %v2234
    %v2236 = vpop.f32.mrf.mxu0
    %v2237 = vadd.f32 %v2068, %v2236
    %2238 = vdwg.mxu0
    %v2239 = vld [vmem:[%s2] sm:$0x1]
    %v2240 = vld [vmem:[%s3] sm:$0x1]
    %v2241 = vadd.f32 %v2080, %v2082
    %v2242 = vadd.f32 %v2241, %v2085
    %v2243 = vadd.f32 %v2242, %v2087
    %v2244 = vadd.f32 %v2243, %v2090
    %v2245 = vadd.f32 %v2244, %v2092
    %v2246 = vadd.f32 %v2245, %v2095
    %v2247 = vadd.f32 %v2246, %v2097
    %v2248 = vadd.f32 %v2247, %v2100
    %v2249 = vadd.f32 %v2248, %v2102
    %v2250 = vadd.f32 %v2249, %v2105
    %v2251 = vadd.f32 %v2250, %v2107
    %v2252 = vadd.f32 %v2251, %v2110
    %v2253 = vadd.f32 %v2252, %v2112
    %v2254 = vadd.f32 %v2253, %v2115
    %v2255 = vadd.f32 %v2254, %v2117
    %v2256 = vadd.f32 %v2255, %v2120
    %v2257 = vadd.f32 %v2256, %v2122
    %v2258 = vadd.f32 %v2257, %v2125
    %v2259 = vadd.f32 %v2258, %v2127
    %v2260 = vadd.f32 %v2259, %v2130
    %v2261 = vadd.f32 %v2260, %v2132
    %v2262 = vadd.f32 %v2261, %v2135
    %v2263 = vadd.f32 %v2262, %v2137
    %v2264 = vadd.f32 %v2263, %v2140
    %v2265 = vadd.f32 %v2264, %v2142
    %v2266 = vadd.f32 %v2265, %v2145
    %v2267 = vadd.f32 %v2266, %v2147
    %v2268 = vadd.f32 %v2267, %v2150
    %v2269 = vadd.f32 %v2268, %v2152
    %v2270 = vadd.f32 %v2269, %v2155
    %v2271 = vadd.f32 %v2270, %v2157
    %v2272 = vadd.f32 %v2271, %v2160
    %v2273 = vadd.f32 %v2272, %v2162
    %v2274 = vadd.f32 %v2273, %v2165
    %v2275 = vadd.f32 %v2274, %v2167
    %v2276 = vadd.f32 %v2275, %v2170
    %v2277 = vadd.f32 %v2276, %v2172
    %v2278 = vadd.f32 %v2277, %v2175
    %v2279 = vadd.f32 %v2278, %v2177
    %v2280 = vadd.f32 %v2279, %v2180
    %v2281 = vadd.f32 %v2280, %v2182
    %v2282 = vadd.f32 %v2281, %v2185
    %v2283 = vadd.f32 %v2282, %v2187
    %v2284 = vadd.f32 %v2283, %v2190
    %v2285 = vadd.f32 %v2284, %v2192
    %v2286 = vadd.f32 %v2285, %v2195
    %v2287 = vadd.f32 %v2286, %v2197
    %v2288 = vadd.f32 %v2287, %v2200
    %v2289 = vadd.f32 %v2288, %v2202
    %v2290 = vadd.f32 %v2289, %v2205
    %v2291 = vadd.f32 %v2290, %v2207
    %v2292 = vadd.f32 %v2291, %v2210
    %v2293 = vadd.f32 %v2292, %v2212
    %v2294 = vadd.f32 %v2293, %v2215
    %v2295 = vadd.f32 %v2294, %v2217
    %v2296 = vadd.f32 %v2295, %v2220
    %v2297 = vadd.f32 %v2296, %v2222
    %v2298 = vadd.f32 %v2297, %v2225
    %v2299 = vadd.f32 %v2298, %v2227
    %v2300 = vadd.f32 %v2299, %v2230
    %v2301 = vadd.f32 %v2300, %v2232
    %v2302 = vadd.f32 %v2301, %v2235
    %v2303 = vadd.f32 %v2302, %v2237
    %v2304 = vrot.slane %v2303, 4
    %v2305 = vadd.f32 %v2303, %v2304
    %v2306 = vrot.slane %v2305, 2
    %v2307 = vadd.f32 %v2305, %v2306
    %v2308 = vrot.slane %v2307, 1
    %v2309 = vadd.f32 %v2307, %v2308
    %v2310 = vrcp.pop 512.0
    %v2311 = vmul.f32 512.0, %v2310
    %v2312 = vsub.f32 1.0, %v2311
    %v2313 = vmul.f32 %v2310, %v2312
    %v2314 = vadd.f32 %v2310, %v2313
    %vm2315 = vweird.f32 %v2310
    %v2316 = vsel %vm2315, %v2310, %v2314
    %v2317 = vmul.f32 %v2309, %v2316
    %v2318 = vsub.f32 %v2080, %v2317
    %v2319 = vsub.f32 %v2082, %v2317
    %v2320 = vsub.f32 %v2085, %v2317
    %v2321 = vsub.f32 %v2087, %v2317
    %v2322 = vsub.f32 %v2090, %v2317
    %v2323 = vsub.f32 %v2092, %v2317
    %v2324 = vsub.f32 %v2095, %v2317
    %v2325 = vsub.f32 %v2097, %v2317
    %v2326 = vsub.f32 %v2100, %v2317
    %v2327 = vsub.f32 %v2102, %v2317
    %v2328 = vsub.f32 %v2105, %v2317
    %v2329 = vsub.f32 %v2107, %v2317
    %v2330 = vsub.f32 %v2110, %v2317
    %v2331 = vsub.f32 %v2112, %v2317
    %v2332 = vsub.f32 %v2115, %v2317
    %v2333 = vsub.f32 %v2117, %v2317
    %v2334 = vsub.f32 %v2120, %v2317
    %v2335 = vsub.f32 %v2122, %v2317
    %v2336 = vsub.f32 %v2125, %v2317
    %v2337 = vsub.f32 %v2127, %v2317
    %v2338 = vsub.f32 %v2130, %v2317
    %v2339 = vsub.f32 %v2132, %v2317
    %v2340 = vsub.f32 %v2135, %v2317
    %v2341 = vsub.f32 %v2137, %v2317
    %v2342 = vsub.f32 %v2140, %v2317
    %v2343 = vsub.f32 %v2142, %v2317
    %v2344 = vsub.f32 %v2145, %v2317
    %v2345 = vsub.f32 %v2147, %v2317
    %v2346 = vsub.f32 %v2150, %v2317
    %v2347 = vsub.f32 %v2152, %v2317
    %v2348 = vsub.f32 %v2155, %v2317
    %v2349 = vsub.f32 %v2157, %v2317
    %v2350 = vsub.f32 %v2160, %v2317
    %v2351 = vsub.f32 %v2162, %v2317
    %v2352 = vsub.f32 %v2165, %v2317
    %v2353 = vsub.f32 %v2167, %v2317
    %v2354 = vsub.f32 %v2170, %v2317
    %v2355 = vsub.f32 %v2172, %v2317
    %v2356 = vsub.f32 %v2175, %v2317
    %v2357 = vsub.f32 %v2177, %v2317
    %v2358 = vsub.f32 %v2180, %v2317
    %v2359 = vsub.f32 %v2182, %v2317
    %v2360 = vsub.f32 %v2185, %v2317
    %v2361 = vsub.f32 %v2187, %v2317
    %v2362 = vsub.f32 %v2190, %v2317
    %v2363 = vsub.f32 %v2192, %v2317
    %v2364 = vsub.f32 %v2195, %v2317
    %v2365 = vsub.f32 %v2197, %v2317
    %v2366 = vsub.f32 %v2200, %v2317
    %v2367 = vsub.f32 %v2202, %v2317
    %v2368 = vsub.f32 %v2205, %v2317
    %v2369 = vsub.f32 %v2207, %v2317
    %v2370 = vsub.f32 %v2210, %v2317
    %v2371 = vsub.f32 %v2212, %v2317
    %v2372 = vsub.f32 %v2215, %v2317
    %v2373 = vsub.f32 %v2217, %v2317
    %v2374 = vsub.f32 %v2220, %v2317
    %v2375 = vsub.f32 %v2222, %v2317
    %v2376 = vsub.f32 %v2225, %v2317
    %v2377 = vsub.f32 %v2227, %v2317
    %v2378 = vsub.f32 %v2230, %v2317
    %v2379 = vsub.f32 %v2232, %v2317
    %v2380 = vsub.f32 %v2235, %v2317
    %v2381 = vsub.f32 %v2237, %v2317
    %v2382 = vmul.f32 %v2318, %v2318
    %v2383 = vmul.f32 %v2319, %v2319
    %v2384 = vmul.f32 %v2320, %v2320
    %v2385 = vmul.f32 %v2321, %v2321
    %v2386 = vmul.f32 %v2322, %v2322
    %v2387 = vmul.f32 %v2323, %v2323
    %v2388 = vmul.f32 %v2324, %v2324
    %v2389 = vmul.f32 %v2325, %v2325
    %v2390 = vmul.f32 %v2326, %v2326
    %v2391 = vmul.f32 %v2327, %v2327
    %v2392 = vmul.f32 %v2328, %v2328
    %v2393 = vmul.f32 %v2329, %v2329
    %v2394 = vmul.f32 %v2330, %v2330
    %v2395 = vmul.f32 %v2331, %v2331
    %v2396 = vmul.f32 %v2332, %v2332
    %v2397 = vmul.f32 %v2333, %v2333
    %v2398 = vmul.f32 %v2334, %v2334
    %v2399 = vmul.f32 %v2335, %v2335
    %v2400 = vmul.f32 %v2336, %v2336
    %v2401 = vmul.f32 %v2337, %v2337
    %v2402 = vmul.f32 %v2338, %v2338
    %v2403 = vmul.f32 %v2339, %v2339
    %v2404 = vmul.f32 %v2340, %v2340
    %v2405 = vmul.f32 %v2341, %v2341
    %v2406 = vmul.f32 %v2342, %v2342
    %v2407 = vmul.f32 %v2343, %v2343
    %v2408 = vmul.f32 %v2344, %v2344
    %v2409 = vmul.f32 %v2345, %v2345
    %v2410 = vmul.f32 %v2346, %v2346
    %v2411 = vmul.f32 %v2347, %v2347
    %v2412 = vmul.f32 %v2348, %v2348
    %v2413 = vmul.f32 %v2349, %v2349
    %v2414 = vmul.f32 %v2350, %v2350
    %v2415 = vmul.f32 %v2351, %v2351
    %v2416 = vmul.f32 %v2352, %v2352
    %v2417 = vmul.f32 %v2353, %v2353
    %v2418 = vmul.f32 %v2354, %v2354
    %v2419 = vmul.f32 %v2355, %v2355
    %v2420 = vmul.f32 %v2356, %v2356
    %v2421 = vmul.f32 %v2357, %v2357
    %v2422 = vmul.f32 %v2358, %v2358
    %v2423 = vmul.f32 %v2359, %v2359
    %v2424 = vmul.f32 %v2360, %v2360
    %v2425 = vmul.f32 %v2361, %v2361
    %v2426 = vmul.f32 %v2362, %v2362
    %v2427 = vmul.f32 %v2363, %v2363
    %v2428 = vmul.f32 %v2364, %v2364
    %v2429 = vmul.f32 %v2365, %v2365
    %v2430 = vmul.f32 %v2366, %v2366
    %v2431 = vmul.f32 %v2367, %v2367
    %v2432 = vmul.f32 %v2368, %v2368
    %v2433 = vmul.f32 %v2369, %v2369
    %v2434 = vmul.f32 %v2370, %v2370
    %v2435 = vmul.f32 %v2371, %v2371
    %v2436 = vmul.f32 %v2372, %v2372
    %v2437 = vmul.f32 %v2373, %v2373
    %v2438 = vmul.f32 %v2374, %v2374
    %v2439 = vmul.f32 %v2375, %v2375
    %v2440 = vmul.f32 %v2376, %v2376
    %v2441 = vmul.f32 %v2377, %v2377
    %v2442 = vmul.f32 %v2378, %v2378
    %v2443 = vmul.f32 %v2379, %v2379
    %v2444 = vmul.f32 %v2380, %v2380
    %v2445 = vmul.f32 %v2381, %v2381
    %v2446 = vadd.f32 %v2382, %v2383
    %v2447 = vadd.f32 %v2446, %v2384
    %v2448 = vadd.f32 %v2447, %v2385
    %v2449 = vadd.f32 %v2448, %v2386
    %v2450 = vadd.f32 %v2449, %v2387
    %v2451 = vadd.f32 %v2450, %v2388
    %v2452 = vadd.f32 %v2451, %v2389
    %v2453 = vadd.f32 %v2452, %v2390
    %v2454 = vadd.f32 %v2453, %v2391
    %v2455 = vadd.f32 %v2454, %v2392
    %v2456 = vadd.f32 %v2455, %v2393
    %v2457 = vadd.f32 %v2456, %v2394
    %v2458 = vadd.f32 %v2457, %v2395
    %v2459 = vadd.f32 %v2458, %v2396
    %v2460 = vadd.f32 %v2459, %v2397
    %v2461 = vadd.f32 %v2460, %v2398
    %v2462 = vadd.f32 %v2461, %v2399
    %v2463 = vadd.f32 %v2462, %v2400
    %v2464 = vadd.f32 %v2463, %v2401
    %v2465 = vadd.f32 %v2464, %v2402
    %v2466 = vadd.f32 %v2465, %v2403
    %v2467 = vadd.f32 %v2466, %v2404
    %v2468 = vadd.f32 %v2467, %v2405
    %v2469 = vadd.f32 %v2468, %v2406
    %v2470 = vadd.f32 %v2469, %v2407
    %v2471 = vadd.f32 %v2470, %v2408
    %v2472 = vadd.f32 %v2471, %v2409
    %v2473 = vadd.f32 %v2472, %v2410
    %v2474 = vadd.f32 %v2473, %v2411
    %v2475 = vadd.f32 %v2474, %v2412
    %v2476 = vadd.f32 %v2475, %v2413
    %v2477 = vadd.f32 %v2476, %v2414
    %v2478 = vadd.f32 %v2477, %v2415
    %v2479 = vadd.f32 %v2478, %v2416
    %v2480 = vadd.f32 %v2479, %v2417
    %v2481 = vadd.f32 %v2480, %v2418
    %v2482 = vadd.f32 %v2481, %v2419
    %v2483 = vadd.f32 %v2482, %v2420
    %v2484 = vadd.f32 %v2483, %v2421
    %v2485 = vadd.f32 %v2484, %v2422
    %v2486 = vadd.f32 %v2485, %v2423
    %v2487 = vadd.f32 %v2486, %v2424
    %v2488 = vadd.f32 %v2487, %v2425
    %v2489 = vadd.f32 %v2488, %v2426
    %v2490 = vadd.f32 %v2489, %v2427
    %v2491 = vadd.f32 %v2490, %v2428
    %v2492 = vadd.f32 %v2491, %v2429
    %v2493 = vadd.f32 %v2492, %v2430
    %v2494 = vadd.f32 %v2493, %v2431
    %v2495 = vadd.f32 %v2494, %v2432
    %v2496 = vadd.f32 %v2495, %v2433
    %v2497 = vadd.f32 %v2496, %v2434
    %v2498 = vadd.f32 %v2497, %v2435
    %v2499 = vadd.f32 %v2498, %v2436
    %v2500 = vadd.f32 %v2499, %v2437
    %v2501 = vadd.f32 %v2500, %v2438
    %v2502 = vadd.f32 %v2501, %v2439
    %v2503 = vadd.f32 %v2502, %v2440
    %v2504 = vadd.f32 %v2503, %v2441
    %v2505 = vadd.f32 %v2504, %v2442
    %v2506 = vadd.f32 %v2505, %v2443
    %v2507 = vadd.f32 %v2506, %v2444
    %v2508 = vadd.f32 %v2507, %v2445
    %v2509 = vrot.slane %v2508, 4
    %v2510 = vadd.f32 %v2508, %v2509
    %v2511 = vrot.slane %v2510, 2
    %v2512 = vadd.f32 %v2510, %v2511
    %v2513 = vrot.slane %v2512, 1
    %v2514 = vadd.f32 %v2512, %v2513
    %v2515 = vmul.f32 %v2514, %v2316
    %v2516 = vadd.f32 %v2515, 1e-05
    %v2517 = vrsqrt.pop %v2516
    %v2518 = vmul.f32 %v2517, %v2516
    %v2519 = vmul.f32 %v2518, %v2517
    %v2520 = vmul.f32 0.5, %v2519
    %v2521 = vsub.f32 1.5, %v2520
    %v2522 = vmul.f32 %v2517, %v2521
    %vm2523 = vweird.f32 %v2516
    %vm2524 = vweird.f32 %v2517
    %vm2525 = vmor %vm2523, %vm2524
    %v2526 = vsel %vm2525, %v2517, %v2522
    %v2527 = vmul.f32 %v2239, %v2526
    %v2528 = vmul.f32 %v2317, %v2527
    %v2529 = vsub.f32 %v2240, %v2528
    %v2531 = vperm.slane %v2527, 0
    %v2533 = vmul.f32 %v2080, %v2531
    %v2534 = vmul.f32 %v2082, %v2531
    %v2535 = vmul.f32 %v2085, %v2531
    %v2536 = vmul.f32 %v2087, %v2531
    %v2537 = vmul.f32 %v2090, %v2531
    %v2538 = vmul.f32 %v2092, %v2531
    %v2539 = vmul.f32 %v2095, %v2531
    %v2540 = vmul.f32 %v2097, %v2531
    %v2541 = vmul.f32 %v2100, %v2531
    %v2542 = vmul.f32 %v2102, %v2531
    %v2543 = vmul.f32 %v2105, %v2531
    %v2544 = vmul.f32 %v2107, %v2531
    %v2545 = vmul.f32 %v2110, %v2531
    %v2546 = vmul.f32 %v2112, %v2531
    %v2547 = vmul.f32 %v2115, %v2531
    %v2548 = vmul.f32 %v2117, %v2531
    %v2549 = vmul.f32 %v2120, %v2531
    %v2550 = vmul.f32 %v2122, %v2531
    %v2551 = vmul.f32 %v2125, %v2531
    %v2552 = vmul.f32 %v2127, %v2531
    %v2553 = vmul.f32 %v2130, %v2531
    %v2554 = vmul.f32 %v2132, %v2531
    %v2555 = vmul.f32 %v2135, %v2531
    %v2556 = vmul.f32 %v2137, %v2531
    %v2557 = vmul.f32 %v2140, %v2531
    %v2558 = vmul.f32 %v2142, %v2531
    %v2559 = vmul.f32 %v2145, %v2531
    %v2560 = vmul.f32 %v2147, %v2531
    %v2561 = vmul.f32 %v2150, %v2531
    %v2562 = vmul.f32 %v2152, %v2531
    %v2563 = vmul.f32 %v2155, %v2531
    %v2564 = vmul.f32 %v2157, %v2531
    %v2565 = vmul.f32 %v2160, %v2531
    %v2566 = vmul.f32 %v2162, %v2531
    %v2567 = vmul.f32 %v2165, %v2531
    %v2568 = vmul.f32 %v2167, %v2531
    %v2569 = vmul.f32 %v2170, %v2531
    %v2570 = vmul.f32 %v2172, %v2531
    %v2571 = vmul.f32 %v2175, %v2531
    %v2572 = vmul.f32 %v2177, %v2531
    %v2573 = vmul.f32 %v2180, %v2531
    %v2574 = vmul.f32 %v2182, %v2531
    %v2575 = vmul.f32 %v2185, %v2531
    %v2576 = vmul.f32 %v2187, %v2531
    %v2577 = vmul.f32 %v2190, %v2531
    %v2578 = vmul.f32 %v2192, %v2531
    %v2579 = vmul.f32 %v2195, %v2531
    %v2580 = vmul.f32 %v2197, %v2531
    %v2581 = vmul.f32 %v2200, %v2531
    %v2582 = vmul.f32 %v2202, %v2531
    %v2583 = vmul.f32 %v2205, %v2531
    %v2584 = vmul.f32 %v2207, %v2531
    %v2585 = vmul.f32 %v2210, %v2531
    %v2586 = vmul.f32 %v2212, %v2531
    %v2587 = vmul.f32 %v2215, %v2531
    %v2588 = vmul.f32 %v2217, %v2531
    %v2589 = vmul.f32 %v2220, %v2531
    %v2590 = vmul.f32 %v2222, %v2531
    %v2591 = vmul.f32 %v2225, %v2531
    %v2592 = vmul.f32 %v2227, %v2531
    %v2593 = vmul.f32 %v2230, %v2531
    %v2594 = vmul.f32 %v2232, %v2531
    %v2595 = vmul.f32 %v2235, %v2531
    %v2596 = vmul.f32 %v2237, %v2531
    %v2598 = vperm.slane %v2529, 0
    %v2600 = vadd.f32 %v2533, %v2598
    %v2601 = vadd.f32 %v2534, %v2598
    %v2602 = vadd.f32 %v2535, %v2598
    %v2603 = vadd.f32 %v2536, %v2598
    %v2604 = vadd.f32 %v2537, %v2598
    %v2605 = vadd.f32 %v2538, %v2598
    %v2606 = vadd.f32 %v2539, %v2598
    %v2607 = vadd.f32 %v2540, %v2598
    %v2608 = vadd.f32 %v2541, %v2598
    %v2609 = vadd.f32 %v2542, %v2598
    %v2610 = vadd.f32 %v2543, %v2598
    %v2611 = vadd.f32 %v2544, %v2598
    %v2612 = vadd.f32 %v2545, %v2598
    %v2613 = vadd.f32 %v2546, %v2598
    %v2614 = vadd.f32 %v2547, %v2598
    %v2615 = vadd.f32 %v2548, %v2598
    %v2616 = vadd.f32 %v2549, %v2598
    %v2617 = vadd.f32 %v2550, %v2598
    %v2618 = vadd.f32 %v2551, %v2598
    %v2619 = vadd.f32 %v2552, %v2598
    %v2620 = vadd.f32 %v2553, %v2598
    %v2621 = vadd.f32 %v2554, %v2598
    %v2622 = vadd.f32 %v2555, %v2598
    %v2623 = vadd.f32 %v2556, %v2598
    %v2624 = vadd.f32 %v2557, %v2598
    %v2625 = vadd.f32 %v2558, %v2598
    %v2626 = vadd.f32 %v2559, %v2598
    %v2627 = vadd.f32 %v2560, %v2598
    %v2628 = vadd.f32 %v2561, %v2598
    %v2629 = vadd.f32 %v2562, %v2598
    %v2630 = vadd.f32 %v2563, %v2598
    %v2631 = vadd.f32 %v2564, %v2598
    %v2632 = vadd.f32 %v2565, %v2598
    %v2633 = vadd.f32 %v2566, %v2598
    %v2634 = vadd.f32 %v2567, %v2598
    %v2635 = vadd.f32 %v2568, %v2598
    %v2636 = vadd.f32 %v2569, %v2598
    %v2637 = vadd.f32 %v2570, %v2598
    %v2638 = vadd.f32 %v2571, %v2598
    %v2639 = vadd.f32 %v2572, %v2598
    %v2640 = vadd.f32 %v2573, %v2598
    %v2641 = vadd.f32 %v2574, %v2598
    %v2642 = vadd.f32 %v2575, %v2598
    %v2643 = vadd.f32 %v2576, %v2598
    %v2644 = vadd.f32 %v2577, %v2598
    %v2645 = vadd.f32 %v2578, %v2598
    %v2646 = vadd.f32 %v2579, %v2598
    %v2647 = vadd.f32 %v2580, %v2598
    %v2648 = vadd.f32 %v2581, %v2598
    %v2649 = vadd.f32 %v2582, %v2598
    %v2650 = vadd.f32 %v2583, %v2598
    %v2651 = vadd.f32 %v2584, %v2598
    %v2652 = vadd.f32 %v2585, %v2598
    %v2653 = vadd.f32 %v2586, %v2598
    %v2654 = vadd.f32 %v2587, %v2598
    %v2655 = vadd.f32 %v2588, %v2598
    %v2656 = vadd.f32 %v2589, %v2598
    %v2657 = vadd.f32 %v2590, %v2598
    %v2658 = vadd.f32 %v2591, %v2598
    %v2659 = vadd.f32 %v2592, %v2598
    %v2660 = vadd.f32 %v2593, %v2598
    %v2661 = vadd.f32 %v2594, %v2598
    %v2662 = vadd.f32 %v2595, %v2598
    %v2663 = vadd.f32 %v2596, %v2598
    %vm2664 = vcmp.ge.f32.partialorder %v2600, 0.0
    %vm2665 = vcmp.ge.f32.partialorder %v2601, 0.0
    %vm2666 = vcmp.ge.f32.partialorder %v2602, 0.0
    %vm2667 = vcmp.ge.f32.partialorder %v2603, 0.0
    %vm2668 = vcmp.ge.f32.partialorder %v2604, 0.0
    %vm2669 = vcmp.ge.f32.partialorder %v2605, 0.0
    %vm2670 = vcmp.ge.f32.partialorder %v2606, 0.0
    %vm2671 = vcmp.ge.f32.partialorder %v2607, 0.0
    %vm2672 = vcmp.ge.f32.partialorder %v2608, 0.0
    %vm2673 = vcmp.ge.f32.partialorder %v2609, 0.0
    %vm2674 = vcmp.ge.f32.partialorder %v2610, 0.0
    %vm2675 = vcmp.ge.f32.partialorder %v2611, 0.0
    %vm2676 = vcmp.ge.f32.partialorder %v2612, 0.0
    %vm2677 = vcmp.ge.f32.partialorder %v2613, 0.0
    %vm2678 = vcmp.ge.f32.partialorder %v2614, 0.0
    %vm2679 = vcmp.ge.f32.partialorder %v2615, 0.0
    %vm2680 = vcmp.ge.f32.partialorder %v2616, 0.0
    %vm2681 = vcmp.ge.f32.partialorder %v2617, 0.0
    %vm2682 = vcmp.ge.f32.partialorder %v2618, 0.0
    %vm2683 = vcmp.ge.f32.partialorder %v2619, 0.0
    %vm2684 = vcmp.ge.f32.partialorder %v2620, 0.0
    %vm2685 = vcmp.ge.f32.partialorder %v2621, 0.0
    %vm2686 = vcmp.ge.f32.partialorder %v2622, 0.0
    %vm2687 = vcmp.ge.f32.partialorder %v2623, 0.0
    %vm2688 = vcmp.ge.f32.partialorder %v2624, 0.0
    %vm2689 = vcmp.ge.f32.partialorder %v2625, 0.0
    %vm2690 = vcmp.ge.f32.partialorder %v2626, 0.0
    %vm2691 = vcmp.ge.f32.partialorder %v2627, 0.0
    %vm2692 = vcmp.ge.f32.partialorder %v2628, 0.0
    %vm2693 = vcmp.ge.f32.partialorder %v2629, 0.0
    %vm2694 = vcmp.ge.f32.partialorder %v2630, 0.0
    %vm2695 = vcmp.ge.f32.partialorder %v2631, 0.0
    %vm2696 = vcmp.ge.f32.partialorder %v2632, 0.0
    %vm2697 = vcmp.ge.f32.partialorder %v2633, 0.0
    %vm2698 = vcmp.ge.f32.partialorder %v2634, 0.0
    %vm2699 = vcmp.ge.f32.partialorder %v2635, 0.0
    %vm2700 = vcmp.ge.f32.partialorder %v2636, 0.0
    %vm2701 = vcmp.ge.f32.partialorder %v2637, 0.0
    %vm2702 = vcmp.ge.f32.partialorder %v2638, 0.0
    %vm2703 = vcmp.ge.f32.partialorder %v2639, 0.0
    %vm2704 = vcmp.ge.f32.partialorder %v2640, 0.0
    %vm2705 = vcmp.ge.f32.partialorder %v2641, 0.0
    %vm2706 = vcmp.ge.f32.partialorder %v2642, 0.0
    %vm2707 = vcmp.ge.f32.partialorder %v2643, 0.0
    %vm2708 = vcmp.ge.f32.partialorder %v2644, 0.0
    %vm2709 = vcmp.ge.f32.partialorder %v2645, 0.0
    %vm2710 = vcmp.ge.f32.partialorder %v2646, 0.0
    %vm2711 = vcmp.ge.f32.partialorder %v2647, 0.0
    %vm2712 = vcmp.ge.f32.partialorder %v2648, 0.0
    %vm2713 = vcmp.ge.f32.partialorder %v2649, 0.0
    %vm2714 = vcmp.ge.f32.partialorder %v2650, 0.0
    %vm2715 = vcmp.ge.f32.partialorder %v2651, 0.0
    %vm2716 = vcmp.ge.f32.partialorder %v2652, 0.0
    %vm2717 = vcmp.ge.f32.partialorder %v2653, 0.0
    %vm2718 = vcmp.ge.f32.partialorder %v2654, 0.0
    %vm2719 = vcmp.ge.f32.partialorder %v2655, 0.0
    %vm2720 = vcmp.ge.f32.partialorder %v2656, 0.0
    %vm2721 = vcmp.ge.f32.partialorder %v2657, 0.0
    %vm2722 = vcmp.ge.f32.partialorder %v2658, 0.0
    %vm2723 = vcmp.ge.f32.partialorder %v2659, 0.0
    %vm2724 = vcmp.ge.f32.partialorder %v2660, 0.0
    %vm2725 = vcmp.ge.f32.partialorder %v2661, 0.0
    %vm2726 = vcmp.ge.f32.partialorder %v2662, 0.0
    %vm2727 = vcmp.ge.f32.partialorder %v2663, 0.0
    %v2728 = vmul.f32 %v2600, 0.2
    %v2729 = vmul.f32 %v2601, 0.2
    %v2730 = vmul.f32 %v2602, 0.2
    %v2731 = vmul.f32 %v2603, 0.2
    %v2732 = vmul.f32 %v2604, 0.2
    %v2733 = vmul.f32 %v2605, 0.2
    %v2734 = vmul.f32 %v2606, 0.2
    %v2735 = vmul.f32 %v2607, 0.2
    %v2736 = vmul.f32 %v2608, 0.2
    %v2737 = vmul.f32 %v2609, 0.2
    %v2738 = vmul.f32 %v2610, 0.2
    %v2739 = vmul.f32 %v2611, 0.2
    %v2740 = vmul.f32 %v2612, 0.2
    %v2741 = vmul.f32 %v2613, 0.2
    %v2742 = vmul.f32 %v2614, 0.2
    %v2743 = vmul.f32 %v2615, 0.2
    %v2744 = vmul.f32 %v2616, 0.2
    %v2745 = vmul.f32 %v2617, 0.2
    %v2746 = vmul.f32 %v2618, 0.2
    %v2747 = vmul.f32 %v2619, 0.2
    %v2748 = vmul.f32 %v2620, 0.2
    %v2749 = vmul.f32 %v2621, 0.2
    %v2750 = vmul.f32 %v2622, 0.2
    %v2751 = vmul.f32 %v2623, 0.2
    %v2752 = vmul.f32 %v2624, 0.2
    %v2753 = vmul.f32 %v2625, 0.2
    %v2754 = vmul.f32 %v2626, 0.2
    %v2755 = vmul.f32 %v2627, 0.2
    %v2756 = vmul.f32 %v2628, 0.2
    %v2757 = vmul.f32 %v2629, 0.2
    %v2758 = vmul.f32 %v2630, 0.2
    %v2759 = vmul.f32 %v2631, 0.2
    %v2760 = vmul.f32 %v2632, 0.2
    %v2761 = vmul.f32 %v2633, 0.2
    %v2762 = vmul.f32 %v2634, 0.2
    %v2763 = vmul.f32 %v2635, 0.2
    %v2764 = vmul.f32 %v2636, 0.2
    %v2765 = vmul.f32 %v2637, 0.2
    %v2766 = vmul.f32 %v2638, 0.2
    %v2767 = vmul.f32 %v2639, 0.2
    %v2768 = vmul.f32 %v2640, 0.2
    %v2769 = vmul.f32 %v2641, 0.2
    %v2770 = vmul.f32 %v2642, 0.2
    %v2771 = vmul.f32 %v2643, 0.2
    %v2772 = vmul.f32 %v2644, 0.2
    %v2773 = vmul.f32 %v2645, 0.2
    %v2774 = vmul.f32 %v2646, 0.2
    %v2775 = vmul.f32 %v2647, 0.2
    %v2776 = vmul.f32 %v2648, 0.2
    %v2777 = vmul.f32 %v2649, 0.2
    %v2778 = vmul.f32 %v2650, 0.2
    %v2779 = vmul.f32 %v2651, 0.2
    %v2780 = vmul.f32 %v2652, 0.2
    %v2781 = vmul.f32 %v2653, 0.2
    %v2782 = vmul.f32 %v2654, 0.2
    %v2783 = vmul.f32 %v2655, 0.2
    %v2784 = vmul.f32 %v2656, 0.2
    %v2785 = vmul.f32 %v2657, 0.2
    %v2786 = vmul.f32 %v2658, 0.2
    %v2787 = vmul.f32 %v2659, 0.2
    %v2788 = vmul.f32 %v2660, 0.2
    %v2789 = vmul.f32 %v2661, 0.2
    %v2790 = vmul.f32 %v2662, 0.2
    %v2791 = vmul.f32 %v2663, 0.2
    %v2792 = vsel %vm2664, %v2600, %v2728
    %v2793 = vsel %vm2665, %v2601, %v2729
    %v2794 = vsel %vm2666, %v2602, %v2730
    %v2795 = vsel %vm2667, %v2603, %v2731
    %v2796 = vsel %vm2668, %v2604, %v2732
    %v2797 = vsel %vm2669, %v2605, %v2733
    %v2798 = vsel %vm2670, %v2606, %v2734
    %v2799 = vsel %vm2671, %v2607, %v2735
    %v2800 = vsel %vm2672, %v2608, %v2736
    %v2801 = vsel %vm2673, %v2609, %v2737
    %v2802 = vsel %vm2674, %v2610, %v2738
    %v2803 = vsel %vm2675, %v2611, %v2739
    %v2804 = vsel %vm2676, %v2612, %v2740
    %v2805 = vsel %vm2677, %v2613, %v2741
    %v2806 = vsel %vm2678, %v2614, %v2742
    %v2807 = vsel %vm2679, %v2615, %v2743
    %v2808 = vsel %vm2680, %v2616, %v2744
    %v2809 = vsel %vm2681, %v2617, %v2745
    %v2810 = vsel %vm2682, %v2618, %v2746
    %v2811 = vsel %vm2683, %v2619, %v2747
    %v2812 = vsel %vm2684, %v2620, %v2748
    %v2813 = vsel %vm2685, %v2621, %v2749
    %v2814 = vsel %vm2686, %v2622, %v2750
    %v2815 = vsel %vm2687, %v2623, %v2751
    %v2816 = vsel %vm2688, %v2624, %v2752
    %v2817 = vsel %vm2689, %v2625, %v2753
    %v2818 = vsel %vm2690, %v2626, %v2754
    %v2819 = vsel %vm2691, %v2627, %v2755
    %v2820 = vsel %vm2692, %v2628, %v2756
    %v2821 = vsel %vm2693, %v2629, %v2757
    %v2822 = vsel %vm2694, %v2630, %v2758
    %v2823 = vsel %vm2695, %v2631, %v2759
    %v2824 = vsel %vm2696, %v2632, %v2760
    %v2825 = vsel %vm2697, %v2633, %v2761
    %v2826 = vsel %vm2698, %v2634, %v2762
    %v2827 = vsel %vm2699, %v2635, %v2763
    %v2828 = vsel %vm2700, %v2636, %v2764
    %v2829 = vsel %vm2701, %v2637, %v2765
    %v2830 = vsel %vm2702, %v2638, %v2766
    %v2831 = vsel %vm2703, %v2639, %v2767
    %v2832 = vsel %vm2704, %v2640, %v2768
    %v2833 = vsel %vm2705, %v2641, %v2769
    %v2834 = vsel %vm2706, %v2642, %v2770
    %v2835 = vsel %vm2707, %v2643, %v2771
    %v2836 = vsel %vm2708, %v2644, %v2772
    %v2837 = vsel %vm2709, %v2645, %v2773
    %v2838 = vsel %vm2710, %v2646, %v2774
    %v2839 = vsel %vm2711, %v2647, %v2775
    %v2840 = vsel %vm2712, %v2648, %v2776
    %v2841 = vsel %vm2713, %v2649, %v2777
    %v2842 = vsel %vm2714, %v2650, %v2778
    %v2843 = vsel %vm2715, %v2651, %v2779
    %v2844 = vsel %vm2716, %v2652, %v2780
    %v2845 = vsel %vm2717, %v2653, %v2781
    %v2846 = vsel %vm2718, %v2654, %v2782
    %v2847 = vsel %vm2719, %v2655, %v2783
    %v2848 = vsel %vm2720, %v2656, %v2784
    %v2849 = vsel %vm2721, %v2657, %v2785
    %v2850 = vsel %vm2722, %v2658, %v2786
    %v2851 = vsel %vm2723, %v2659, %v2787
    %v2852 = vsel %vm2724, %v2660, %v2788
    %v2853 = vsel %vm2725, %v2661, %v2789
    %v2854 = vsel %vm2726, %v2662, %v2790
    %v2855 = vsel %vm2727, %v2663, %v2791
    %v2856 = vpack.c.bf16 %v2792, %v2792
    %v2857 = vpack.c.bf16 %v2793, %v2793
    %v2858 = vpack.c.bf16 %v2794, %v2794
    %v2859 = vpack.c.bf16 %v2795, %v2795
    %v2860 = vpack.c.bf16 %v2796, %v2796
    %v2861 = vpack.c.bf16 %v2797, %v2797
    %v2862 = vpack.c.bf16 %v2798, %v2798
    %v2863 = vpack.c.bf16 %v2799, %v2799
    %v2864 = vpack.c.bf16 %v2800, %v2800
    %v2865 = vpack.c.bf16 %v2801, %v2801
    %v2866 = vpack.c.bf16 %v2802, %v2802
    %v2867 = vpack.c.bf16 %v2803, %v2803
    %v2868 = vpack.c.bf16 %v2804, %v2804
    %v2869 = vpack.c.bf16 %v2805, %v2805
    %v2870 = vpack.c.bf16 %v2806, %v2806
    %v2871 = vpack.c.bf16 %v2807, %v2807
    %v2872 = vpack.c.bf16 %v2808, %v2808
    %v2873 = vpack.c.bf16 %v2809, %v2809
    %v2874 = vpack.c.bf16 %v2810, %v2810
    %v2875 = vpack.c.bf16 %v2811, %v2811
    %v2876 = vpack.c.bf16 %v2812, %v2812
    %v2877 = vpack.c.bf16 %v2813, %v2813
    %v2878 = vpack.c.bf16 %v2814, %v2814
    %v2879 = vpack.c.bf16 %v2815, %v2815
    %v2880 = vpack.c.bf16 %v2816, %v2816
    %v2881 = vpack.c.bf16 %v2817, %v2817
    %v2882 = vpack.c.bf16 %v2818, %v2818
    %v2883 = vpack.c.bf16 %v2819, %v2819
    %v2884 = vpack.c.bf16 %v2820, %v2820
    %v2885 = vpack.c.bf16 %v2821, %v2821
    %v2886 = vpack.c.bf16 %v2822, %v2822
    %v2887 = vpack.c.bf16 %v2823, %v2823
    %v2888 = vpack.c.bf16 %v2824, %v2824
    %v2889 = vpack.c.bf16 %v2825, %v2825
    %v2890 = vpack.c.bf16 %v2826, %v2826
    %v2891 = vpack.c.bf16 %v2827, %v2827
    %v2892 = vpack.c.bf16 %v2828, %v2828
    %v2893 = vpack.c.bf16 %v2829, %v2829
    %v2894 = vpack.c.bf16 %v2830, %v2830
    %v2895 = vpack.c.bf16 %v2831, %v2831
    %v2896 = vpack.c.bf16 %v2832, %v2832
    %v2897 = vpack.c.bf16 %v2833, %v2833
    %v2898 = vpack.c.bf16 %v2834, %v2834
    %v2899 = vpack.c.bf16 %v2835, %v2835
    %v2900 = vpack.c.bf16 %v2836, %v2836
    %v2901 = vpack.c.bf16 %v2837, %v2837
    %v2902 = vpack.c.bf16 %v2838, %v2838
    %v2903 = vpack.c.bf16 %v2839, %v2839
    %v2904 = vpack.c.bf16 %v2840, %v2840
    %v2905 = vpack.c.bf16 %v2841, %v2841
    %v2906 = vpack.c.bf16 %v2842, %v2842
    %v2907 = vpack.c.bf16 %v2843, %v2843
    %v2908 = vpack.c.bf16 %v2844, %v2844
    %v2909 = vpack.c.bf16 %v2845, %v2845
    %v2910 = vpack.c.bf16 %v2846, %v2846
    %v2911 = vpack.c.bf16 %v2847, %v2847
    %v2912 = vpack.c.bf16 %v2848, %v2848
    %v2913 = vpack.c.bf16 %v2849, %v2849
    %v2914 = vpack.c.bf16 %v2850, %v2850
    %v2915 = vpack.c.bf16 %v2851, %v2851
    %v2916 = vpack.c.bf16 %v2852, %v2852
    %v2917 = vpack.c.bf16 %v2853, %v2853
    %v2918 = vpack.c.bf16 %v2854, %v2854
    %v2919 = vpack.c.bf16 %v2855, %v2855
    %2920 = vst [vmem:[#allocation7] sm:$0xf] %v2856
    %2921 = vst [vmem:[#allocation7 + $0x4] sm:$0xf] %v2857
    %2922 = vst [vmem:[#allocation7 + $0x8] sm:$0xf] %v2858
    %2923 = vst [vmem:[#allocation7 + $0xc] sm:$0xf] %v2859
    %2924 = vst [vmem:[#allocation7 + $0x10] sm:$0xf] %v2860
    %2925 = vst [vmem:[#allocation7 + $0x14] sm:$0xf] %v2861
    %2926 = vst [vmem:[#allocation7 + $0x18] sm:$0xf] %v2862
    %2927 = vst [vmem:[#allocation7 + $0x1c] sm:$0xf] %v2863
    %2928 = vst [vmem:[#allocation7 + $0x20] sm:$0xf] %v2864
    %2929 = vst [vmem:[#allocation7 + $0x24] sm:$0xf] %v2865
    %2930 = vst [vmem:[#allocation7 + $0x28] sm:$0xf] %v2866
    %2931 = vst [vmem:[#allocation7 + $0x2c] sm:$0xf] %v2867
    %2932 = vst [vmem:[#allocation7 + $0x30] sm:$0xf] %v2868
    %2933 = vst [vmem:[#allocation7 + $0x34] sm:$0xf] %v2869
    %2934 = vst [vmem:[#allocation7 + $0x38] sm:$0xf] %v2870
    %2935 = vst [vmem:[#allocation7 + $0x3c] sm:$0xf] %v2871
    %2936 = vst [vmem:[#allocation7 + $0x40] sm:$0xf] %v2872
    %2937 = vst [vmem:[#allocation7 + $0x44] sm:$0xf] %v2873
    %2938 = vst [vmem:[#allocation7 + $0x48] sm:$0xf] %v2874
    %2939 = vst [vmem:[#allocation7 + $0x4c] sm:$0xf] %v2875
    %2940 = vst [vmem:[#allocation7 + $0x50] sm:$0xf] %v2876
    %2941 = vst [vmem:[#allocation7 + $0x54] sm:$0xf] %v2877
    %2942 = vst [vmem:[#allocation7 + $0x58] sm:$0xf] %v2878
    %2943 = vst [vmem:[#allocation7 + $0x5c] sm:$0xf] %v2879
    %2944 = vst [vmem:[#allocation7 + $0x60] sm:$0xf] %v2880
    %2945 = vst [vmem:[#allocation7 + $0x64] sm:$0xf] %v2881
    %2946 = vst [vmem:[#allocation7 + $0x68] sm:$0xf] %v2882
    %2947 = vst [vmem:[#allocation7 + $0x6c] sm:$0xf] %v2883
    %2948 = vst [vmem:[#allocation7 + $0x70] sm:$0xf] %v2884
    %2949 = vst [vmem:[#allocation7 + $0x74] sm:$0xf] %v2885
    %2950 = vst [vmem:[#allocation7 + $0x78] sm:$0xf] %v2886
    %2951 = vst [vmem:[#allocation7 + $0x7c] sm:$0xf] %v2887
    %2952 = vst [vmem:[#allocation7 + $0x80] sm:$0xf] %v2888
    %2953 = vst [vmem:[#allocation7 + $0x84] sm:$0xf] %v2889
    %2954 = vst [vmem:[#allocation7 + $0x88] sm:$0xf] %v2890
    %2955 = vst [vmem:[#allocation7 + $0x8c] sm:$0xf] %v2891
    %2956 = vst [vmem:[#allocation7 + $0x90] sm:$0xf] %v2892
    %2957 = vst [vmem:[#allocation7 + $0x94] sm:$0xf] %v2893
    %2958 = vst [vmem:[#allocation7 + $0x98] sm:$0xf] %v2894
    %2959 = vst [vmem:[#allocation7 + $0x9c] sm:$0xf] %v2895
    %2960 = vst [vmem:[#allocation7 + $0xa0] sm:$0xf] %v2896
    %2961 = vst [vmem:[#allocation7 + $0xa4] sm:$0xf] %v2897
    %2962 = vst [vmem:[#allocation7 + $0xa8] sm:$0xf] %v2898
    %2963 = vst [vmem:[#allocation7 + $0xac] sm:$0xf] %v2899
    %2964 = vst [vmem:[#allocation7 + $0xb0] sm:$0xf] %v2900
    %2965 = vst [vmem:[#allocation7 + $0xb4] sm:$0xf] %v2901
    %2966 = vst [vmem:[#allocation7 + $0xb8] sm:$0xf] %v2902
    %2967 = vst [vmem:[#allocation7 + $0xbc] sm:$0xf] %v2903
    %2968 = vst [vmem:[#allocation7 + $0xc0] sm:$0xf] %v2904
    %2969 = vst [vmem:[#allocation7 + $0xc4] sm:$0xf] %v2905
    %2970 = vst [vmem:[#allocation7 + $0xc8] sm:$0xf] %v2906
    %2971 = vst [vmem:[#allocation7 + $0xcc] sm:$0xf] %v2907
    %2972 = vst [vmem:[#allocation7 + $0xd0] sm:$0xf] %v2908
    %2973 = vst [vmem:[#allocation7 + $0xd4] sm:$0xf] %v2909
    %2974 = vst [vmem:[#allocation7 + $0xd8] sm:$0xf] %v2910
    %2975 = vst [vmem:[#allocation7 + $0xdc] sm:$0xf] %v2911
    %2976 = vst [vmem:[#allocation7 + $0xe0] sm:$0xf] %v2912
    %2977 = vst [vmem:[#allocation7 + $0xe4] sm:$0xf] %v2913
    %2978 = vst [vmem:[#allocation7 + $0xe8] sm:$0xf] %v2914
    %2979 = vst [vmem:[#allocation7 + $0xec] sm:$0xf] %v2915
    %2980 = vst [vmem:[#allocation7 + $0xf0] sm:$0xf] %v2916
    %2981 = vst [vmem:[#allocation7 + $0xf4] sm:$0xf] %v2917
    %2982 = vst [vmem:[#allocation7 + $0xf8] sm:$0xf] %v2918
    %2983 = vst [vmem:[#allocation7 + $0xfc] sm:$0xf] %v2919
    // Predicated region
    $region26: #{tpu_custom_call.1} parent=1 // pred_check
      _
    $region27: #{tpu_custom_call.1} parent=1 // pred_check_branch
      %2985 = sbr.rel (0) target = $region29
    $region28: #{tpu_custom_call.1} parent=1 // pred_region
      %2987 = vsyncadd [#allocation4], 0
      %s2988 = sshll.u32 [#allocation7], 4
      %s2989 = int_to_ptr.vmem [resolvable:$true] %s2988
      %s2990 = sshll.u32 %s4, 4
      %s2991 = int_to_ptr.hbm [resolvable:$true] %s2990
      %2996 = dma.vmem_to_hbm [thread:$0]  %s2989, 4096, %s2991, [#allocation4], 64, 64, 4
    $region29: #{tpu_custom_call.1} parent=1 // pred_fallthru
      _
    // Predicated region
    $region30: #{tpu_custom_call.1} parent=1 // pred_check
      _
    $region31: #{tpu_custom_call.1} parent=1 // pred_check_branch
      %2998 = sbr.rel (0) target = $region33
    $region32: #{tpu_custom_call.1} parent=1 // pred_region
      %3000 = dma.done [#allocation4], 4096
    $region33: #{tpu_custom_call.1} parent=1 // pred_fallthru
      _
    %3001 = vsyncpa [#allocation3], 1
    %3002 = vsyncpa [#allocation6], 1
    %3003 = vsyncpa [#allocation4], 1

</llo_original>
